<compile_context>
chip_gen: v5e
topology: v5e:2x2
jax: 0.10.0
libtpu: 0.0.40
codegen_flags: <defaults>
</compile_context>

<pallas_src>
import math
import functools

import jax
import jax.numpy as jnp
import numpy as np
from jax.experimental import pallas as pl
from jax.experimental.pallas import tpu as pltpu


def _layernorm(x, gamma, beta, eps=1e-5):
    mean = jnp.mean(x, axis=-1, keepdims=True)
    var = jnp.mean((x - mean) ** 2, axis=-1, keepdims=True)
    return (x - mean) * jax.lax.rsqrt(var + eps) * gamma + beta


def block_kernel(num_heads, dh, seq_len, fc_hidden_dim,
                 x_ref, w_qkv_ref, w_fc_ref, w1_ref, w2_ref, vec_ref, out_ref):
    rows, H = x_ref.shape            # rows = batches_in_block * seq_len
    bb = rows // seq_len
    nh_dh = num_heads * dh
    n_qkv = 3 * nh_dh

    x = x_ref[...]                   # (rows, H); flattened by the wrapper

    vecs = vec_ref[...]              # (8, W) packed bias / LN vectors
    b_qkv = vecs[0:1, :n_qkv]
    b_fc = vecs[1:2, :H]
    b1 = vecs[2:3, :fc_hidden_dim]
    b2 = vecs[3:4, :H]
    ln1_g = vecs[4:5, :H]
    ln1_b = vecs[5:6, :H]
    ln2_g = vecs[6:7, :H]
    ln2_b = vecs[7:8, :H]

    # --- fused QKV projection: one MXU push for all heads & batches ---------
    # (Q columns / bias pre-scaled by 1/sqrt(dh) at pack time.)
    qkv = jnp.dot(x, w_qkv_ref[...], preferred_element_type=jnp.float32) + b_qkv
    # sublane split (seq_len is a multiple of 8 here): no lane relayout.
    qkv = qkv.reshape(bb, seq_len, n_qkv)

    w_fc = w_fc_ref[...]             # (nh*dh, H); row slices below are sublane-aligned

    # Residual + output-projection bias seed the accumulator (no zeros fill,
    # no extra post-loop adds).
    attn = x + b_fc

    # --- per-head attention --------------------------------------------------
    # Softmax over the QUERY axis (axis=1 of (b, Sq, Sk)) — torch dim=1 quirk.
    # Head outputs are folded straight into the output projection via sublane
    # row-slices of w_fc (no lane-axis concat of head outputs).
    # TODO(synk): the review's single head-batched rank-4 einsum
    # ('bqhd,bkhd->bhqk' / 'bhqk,bkhd->bqhd') was not used because Mosaic's
    # in-kernel dot_general support beyond a single batch dim is not
    # guaranteed; the static rank-3 loop below is known to lower cleanly.
    for h in range(num_heads):
        q = qkv[:, :, h * dh:(h + 1) * dh]                                   # (bb, S, dh)
        k = qkv[:, :, nh_dh + h * dh:nh_dh + (h + 1) * dh]
        v = qkv[:, :, 2 * nh_dh + h * dh:2 * nh_dh + (h + 1) * dh]
        s = jnp.einsum('bqd,bkd->bqk', q, k, preferred_element_type=jnp.float32)
        m = jnp.max(s, axis=1, keepdims=True)
        e = jnp.exp(s - m)
        denom = jnp.sum(e, axis=1, keepdims=True)
        r = pl.reciprocal(denom, approx=True)        # EUP slot (vrcp)
        r = r * (2.0 - denom * r)                    # one Newton step -> ~1e-7 rel err
        p = e * r
        o = jnp.einsum('bqk,bkd->bqd', p, v, preferred_element_type=jnp.float32)
        attn = attn + jnp.dot(o.reshape(rows, dh),
                              w_fc[h * dh:(h + 1) * dh, :],
                              preferred_element_type=jnp.float32)

    # attention_drop: identity (eval mode); residual already included above.
    attn = _layernorm(attn, ln1_g, ln1_b)

    # --- feed-forward (exact erf-based GELU == torch F.gelu default) --------
    h1 = jnp.dot(attn, w1_ref[...], preferred_element_type=jnp.float32) + b1
    h1 = 0.5 * h1 * (1.0 + jax.lax.erf(h1 * (1.0 / math.sqrt(2.0))))
    fc = jnp.dot(h1, w2_ref[...], preferred_element_type=jnp.float32) + b2

    # fc_drop: identity; residual + LayerNorm.
    fc = fc + attn
    # TODO(synk): H=32 (<128 lanes) -> masked stores; padding H to 128 would
    # require masked LayerNorm statistics and changes the module contract, so
    # the lane-dense-output optimization is intentionally skipped here.
    out_ref[...] = _layernorm(fc, ln2_g, ln2_b)


def pack_params(params, num_heads, fc_hidden_dim):
    """Pack 17 small parameter tensors into 5 arrays, folding 1/sqrt(d_k) into
    the Q weight/bias.  w_fc stays a separate array so the kernel never slices
    a weight slab at a non-128-aligned lane offset."""
    wq = params["wq"]
    nh, H, dh = wq.shape
    inv = 1.0 / math.sqrt(dh)

    cat_h = lambda w: jnp.concatenate([w[h] for h in range(nh)], axis=1)
    wq_all = cat_h(params["wq"]) * inv          # (H, nh*dh), pre-scaled
    wk_all = cat_h(params["wk"])
    wv_all = cat_h(params["wv"])
    w_qkv = jnp.concatenate([wq_all, wk_all, wv_all], axis=1)   # (H, 3*nh*dh)
    w_fc = params["wfc"]                                        # (nh*dh, H)

    bq_all = cat_h(params["bq"]) * inv          # (1, nh*dh), pre-scaled
    bk_all = cat_h(params["bk"])
    bv_all = cat_h(params["bv"])
    b_qkv = jnp.concatenate([bq_all, bk_all, bv_all], axis=1)   # (1, 3*nh*dh)

    VW = max(3 * nh * dh, fc_hidden_dim, H)

    def row(v):
        v = v.reshape(1, -1)
        return jnp.pad(v, ((0, 0), (0, VW - v.shape[1])))

    vecs = jnp.concatenate([
        row(b_qkv), row(params["bfc"]), row(params["b1"]), row(params["b2"]),
        row(params["ln1_g"]), row(params["ln1_b"]),
        row(params["ln2_g"]), row(params["ln2_b"]),
    ], axis=0)                                   # (8, VW)

    return w_qkv, w_fc, params["w1"], params["w2"], vecs


def block_forward(hidden, params, num_heads, *, batch_block=None):
    """hidden: (B, S, H) float32. params: dict of per-head weights (see init_params).

    batch_block: batches per grid step.  None -> all of B in one step (best on
    single-TC v5e/v6e at small sizes).  Set e.g. batch_block=B//2 on v7x so the
    "parallel" batch grid shards across both TensorCores with weights resident.
    """
    B, S, H = hidden.shape
    nh, Hw, dh = params["wq"].shape
    head_dim = params["wfc"].shape[0]
    fc_hidden_dim = params["w1"].shape[1]
    # Residual adds require head_dim == hidden_dim and hidden_dim == num_heads*dh.
    assert H == Hw and head_dim == H and num_heads * dh == head_dim and nh == num_heads

    if batch_block is None:
        batch_block = B
    assert B % batch_block == 0
    num_steps = B // batch_block
    rows = batch_block * S

    w_qkv, w_fc, w1, w2, vecs = pack_params(params, num_heads, fc_hidden_dim)
    kernel = functools.partial(block_kernel, num_heads, dh, S, fc_hidden_dim)

    # Flatten in the wrapper (XLA metadata op) so the kernel sees a plain 2-D
    # (rows, H) activation and stores 2-D (simpler epilogue, no in-kernel
    # reshape of the input/output).
    x2 = hidden.reshape(B * S, H)

    out2 = pl.pallas_call(
        kernel,
        out_shape=jax.ShapeDtypeStruct((B * S, H), jnp.float32),
        grid=(num_steps,),
        in_specs=[
            pl.BlockSpec((rows, H), lambda i: (i, 0)),
            # Weights / packed vectors: constant index maps -> DMA'd once and
            # kept resident across all grid steps.
            pl.BlockSpec(w_qkv.shape, lambda i: (0, 0)),
            pl.BlockSpec(w_fc.shape, lambda i: (0, 0)),
            pl.BlockSpec(w1.shape, lambda i: (0, 0)),
            pl.BlockSpec(w2.shape, lambda i: (0, 0)),
            pl.BlockSpec(vecs.shape, lambda i: (0, 0)),
        ],
        out_specs=pl.BlockSpec((rows, H), lambda i: (i, 0)),
        compiler_params=pltpu.CompilerParams(
            dimension_semantics=("parallel",)),
    )(x2, w_qkv, w_fc, w1, w2, vecs)
    return out2.reshape(B, S, H)


def init_params(key, hidden_dim, head_dim, num_heads, fc_hidden_dim):
    dh = head_dim // num_heads
    ks = jax.random.split(key, 8)
    scale = 0.02
    params = {
        "wq": scale * jax.random.normal(ks[0], (num_heads, hidden_dim, dh), jnp.float32),
        "bq": scale * jax.random.normal(ks[1], (num_heads, 1, dh), jnp.float32),
        "wk": scale * jax.random.normal(ks[2], (num_heads, hidden_dim, dh), jnp.float32),
        "bk": scale * jax.random.normal(ks[3], (num_heads, 1, dh), jnp.float32),
        "wv": scale * jax.random.normal(ks[4], (num_heads, hidden_dim, dh), jnp.float32),
        "bv": scale * jax.random.normal(ks[5], (num_heads, 1, dh), jnp.float32),
        "wfc": scale * jax.random.normal(ks[6], (head_dim, head_dim), jnp.float32),
        "bfc": jnp.zeros((1, head_dim), jnp.float32),
        "ln1_g": jnp.ones((1, head_dim), jnp.float32),
        "ln1_b": jnp.zeros((1, head_dim), jnp.float32),
        "w1": scale * jax.random.normal(ks[7], (head_dim, fc_hidden_dim), jnp.float32),
        "b1": jnp.zeros((1, fc_hidden_dim), jnp.float32),
        "w2": scale * jax.random.normal(jax.random.fold_in(key, 99),
                                        (fc_hidden_dim, head_dim), jnp.float32),
        "b2": jnp.zeros((1, head_dim), jnp.float32),
        "ln2_g": jnp.ones((1, head_dim), jnp.float32),
        "ln2_b": jnp.zeros((1, head_dim), jnp.float32),
    }
    return params


def block_forward_ref(hidden, params, num_heads):
    """Pure-JAX reference mirroring the PyTorch forward (eval mode)."""
    x = hidden
    head_outs = []
    for h in range(num_heads):
        q = x @ params["wq"][h] + params["bq"][h]
        k = x @ params["wk"][h] + params["bk"][h]
        v = x @ params["wv"][h] + params["bv"][h]
        s = jnp.einsum("bqd,bkd->bqk", q, k) / math.sqrt(q.shape[-1])
        p = jax.nn.softmax(s, axis=1)          # torch softmax dim=1 quirk
        head_outs.append(jnp.einsum("bqk,bkd->bqd", p, v))
    attn = jnp.concatenate(head_outs, axis=-1)
    attn = attn @ params["wfc"] + params["bfc"]
    attn = attn + x
    attn = _layernorm(attn, params["ln1_g"], params["ln1_b"])
    h1 = attn @ params["w1"] + params["b1"]
    h1 = 0.5 * h1 * (1.0 + jax.lax.erf(h1 / math.sqrt(2.0)))
    fc = h1 @ params["w2"] + params["b2"]
    fc = fc + attn
    return _layernorm(fc, params["ln2_g"], params["ln2_b"])


if __name__ == "__main__":
    B, S = 2, 8
    hidden_dim = head_dim = 32          # residual requires head_dim == hidden_dim
    num_heads = 4
    fc_hidden_dim = 64

    key = jax.random.PRNGKey(0)
    k_x, k_p = jax.random.split(key)
    hidden = jax.random.normal(k_x, (B, S, hidden_dim), jnp.float32)
    params = init_params(k_p, hidden_dim, head_dim, num_heads, fc_hidden_dim)

    ref = block_forward_ref(hidden, params, num_heads)

    # Merged single-step form (default; best on single-TC v5e/v6e at tiny sizes).
    out = jax.block_until_ready(block_forward(hidden, params, num_heads))
    np.testing.assert_allclose(np.asarray(out), np.asarray(ref), atol=1e-4, rtol=1e-4)

    # Batch-tiled form (grid over B, "parallel" -> shards across v7x's two
    # TensorCores; weights stay resident via constant index maps).
    out_tiled = jax.block_until_ready(
        block_forward(hidden, params, num_heads, batch_block=1))
    np.testing.assert_allclose(np.asarray(out_tiled), np.asarray(ref), atol=1e-4, rtol=1e-4)

    print("KERNEL_OK")
</pallas_src>

<mosaic_0001>
module attributes {stable_mosaic.version = 11 : i64} {
  func.func @block_kernel(%arg0: i32, %arg1: memref<16x32xf32, #tpu.memory_space<vmem>>, %arg2: memref<32x96xf32, #tpu.memory_space<vmem>>, %arg3: memref<32x32xf32, #tpu.memory_space<vmem>>, %arg4: memref<32x64xf32, #tpu.memory_space<vmem>>, %arg5: memref<64x32xf32, #tpu.memory_space<vmem>>, %arg6: memref<8x96xf32, #tpu.memory_space<vmem>>, %arg7: memref<16x32xf32, #tpu.memory_space<vmem>>) attributes {dimension_semantics = [#tpu.dimension_semantics<parallel>], iteration_bounds = array<i64: 1>, scalar_prefetch = 0 : i64, scratch_operands = 0 : i64, tpu.core_type = #tpu.core_type<tc>, window_params = [{transform_indices = @transform_0, window_bounds = array<i64: 16, 32>}, {pipeline_mode = #tpu.pipeline_mode<synchronous>, transform_indices = @transform_1, window_bounds = array<i64: 32, 96>}, {pipeline_mode = #tpu.pipeline_mode<synchronous>, transform_indices = @transform_2, window_bounds = array<i64: 32, 32>}, {pipeline_mode = #tpu.pipeline_mode<synchronous>, transform_indices = @transform_3, window_bounds = array<i64: 32, 64>}, {pipeline_mode = #tpu.pipeline_mode<synchronous>, transform_indices = @transform_4, window_bounds = array<i64: 64, 32>}, {pipeline_mode = #tpu.pipeline_mode<synchronous>, transform_indices = @transform_5, window_bounds = array<i64: 8, 96>}, {transform_indices = @transform_6, window_bounds = array<i64: 16, 32>}]} {
    %c0 = arith.constant 0 : index
    %c0_0 = arith.constant 0 : index
    %0 = vector.load %arg1[%c0, %c0_0] : memref<16x32xf32, #tpu.memory_space<vmem>>, vector<16x32xf32>
    %c0_1 = arith.constant 0 : index
    %c0_2 = arith.constant 0 : index
    %1 = vector.load %arg6[%c0_1, %c0_2] : memref<8x96xf32, #tpu.memory_space<vmem>>, vector<8x96xf32>
    %2 = vector.extract_strided_slice %1 {offsets = [0, 0], sizes = [1, 96], strides = [1, 1]} : vector<8x96xf32> to vector<1x96xf32>
    %3 = vector.extract_strided_slice %1 {offsets = [1, 0], sizes = [1, 32], strides = [1, 1]} : vector<8x96xf32> to vector<1x32xf32>
    %4 = vector.extract_strided_slice %1 {offsets = [2, 0], sizes = [1, 64], strides = [1, 1]} : vector<8x96xf32> to vector<1x64xf32>
    %5 = vector.extract_strided_slice %1 {offsets = [3, 0], sizes = [1, 32], strides = [1, 1]} : vector<8x96xf32> to vector<1x32xf32>
    %6 = vector.extract_strided_slice %1 {offsets = [4, 0], sizes = [1, 32], strides = [1, 1]} : vector<8x96xf32> to vector<1x32xf32>
    %7 = vector.extract_strided_slice %1 {offsets = [5, 0], sizes = [1, 32], strides = [1, 1]} : vector<8x96xf32> to vector<1x32xf32>
    %8 = vector.extract_strided_slice %1 {offsets = [6, 0], sizes = [1, 32], strides = [1, 1]} : vector<8x96xf32> to vector<1x32xf32>
    %9 = vector.extract_strided_slice %1 {offsets = [7, 0], sizes = [1, 32], strides = [1, 1]} : vector<8x96xf32> to vector<1x32xf32>
    %c0_3 = arith.constant 0 : index
    %c0_4 = arith.constant 0 : index
    %10 = vector.load %arg2[%c0_3, %c0_4] : memref<32x96xf32, #tpu.memory_space<vmem>>, vector<32x96xf32>
    %cst = arith.constant dense<0.000000e+00> : vector<16x96xf32>
    %11 = tpu.matmul %0, %10, %cst {dimension_numbers = #tpu.dot_dimension_numbers<[1], [0], [0], [1], [0, 0, 1, 1], [], []>} : vector<16x32xf32>, vector<32x96xf32>, vector<16x96xf32> -> vector<16x96xf32>
    %12 = vector.broadcast %2 : vector<1x96xf32> to vector<16x96xf32>
    %13 = arith.addf %11, %12 : vector<16x96xf32>
    %14 = vector.shape_cast %13 : vector<16x96xf32> to vector<2x8x96xf32>
    %c0_5 = arith.constant 0 : index
    %c0_6 = arith.constant 0 : index
    %15 = vector.load %arg3[%c0_5, %c0_6] : memref<32x32xf32, #tpu.memory_space<vmem>>, vector<32x32xf32>
    %16 = vector.broadcast %3 : vector<1x32xf32> to vector<16x32xf32>
    %17 = arith.addf %0, %16 : vector<16x32xf32>
    %18 = vector.extract_strided_slice %14 {offsets = [0, 0, 0], sizes = [2, 8, 8], strides = [1, 1, 1]} : vector<2x8x96xf32> to vector<2x8x8xf32>
    %19 = vector.extract_strided_slice %14 {offsets = [0, 0, 32], sizes = [2, 8, 8], strides = [1, 1, 1]} : vector<2x8x96xf32> to vector<2x8x8xf32>
    %20 = vector.extract_strided_slice %14 {offsets = [0, 0, 64], sizes = [2, 8, 8], strides = [1, 1, 1]} : vector<2x8x96xf32> to vector<2x8x8xf32>
    "tpu.trace_start"() <{level = 10 : i32, message = "bqd,bkd->bqk"}> : () -> ()
    %cst_7 = arith.constant dense<0.000000e+00> : vector<2x8x8xf32>
    %21 = tpu.matmul %18, %19, %cst_7 {dimension_numbers = #tpu.dot_dimension_numbers<[2], [2], [1], [1], [0, 0, 0, 1, 1, 1], [0], [0]>} : vector<2x8x8xf32>, vector<2x8x8xf32>, vector<2x8x8xf32> -> vector<2x8x8xf32>
    "tpu.trace_stop"() : () -> ()
    %cst_8 = arith.constant dense<0xFF800000> : vector<2x8xf32>
    %22 = vector.multi_reduction <maximumf>, %21, %cst_8 [1] : vector<2x8x8xf32> to vector<2x8xf32>
    %23 = vector.shape_cast %22 : vector<2x8xf32> to vector<2x1x8xf32>
    %24 = vector.broadcast %23 : vector<2x1x8xf32> to vector<2x8x8xf32>
    %25 = arith.subf %21, %24 : vector<2x8x8xf32>
    %26 = math.exp %25 : vector<2x8x8xf32>
    %cst_9 = arith.constant dense<0.000000e+00> : vector<2x8xf32>
    %27 = vector.multi_reduction <add>, %26, %cst_9 [1] : vector<2x8x8xf32> to vector<2x8xf32>
    %28 = vector.shape_cast %27 : vector<2x8xf32> to vector<2x1x8xf32>
    %29 = tpu.reciprocal %28 {approx = true} : vector<2x1x8xf32> -> vector<2x1x8xf32>
    %30 = arith.mulf %28, %29 : vector<2x1x8xf32>
    %cst_10 = arith.constant 2.000000e+00 : f32
    %31 = vector.broadcast %cst_10 : f32 to vector<2x1x8xf32>
    %32 = arith.subf %31, %30 : vector<2x1x8xf32>
    %33 = arith.mulf %29, %32 : vector<2x1x8xf32>
    %34 = vector.broadcast %33 : vector<2x1x8xf32> to vector<2x8x8xf32>
    %35 = arith.mulf %26, %34 : vector<2x8x8xf32>
    "tpu.trace_start"() <{level = 10 : i32, message = "bqk,bkd->bqd"}> : () -> ()
    %cst_11 = arith.constant dense<0.000000e+00> : vector<2x8x8xf32>
    %36 = tpu.matmul %35, %20, %cst_11 {dimension_numbers = #tpu.dot_dimension_numbers<[2], [1], [1], [2], [0, 0, 0, 1, 1, 2], [0], [0]>} : vector<2x8x8xf32>, vector<2x8x8xf32>, vector<2x8x8xf32> -> vector<2x8x8xf32>
    "tpu.trace_stop"() : () -> ()
    %37 = vector.shape_cast %36 : vector<2x8x8xf32> to vector<16x8xf32>
    %38 = vector.extract_strided_slice %15 {offsets = [0, 0], sizes = [8, 32], strides = [1, 1]} : vector<32x32xf32> to vector<8x32xf32>
    %cst_12 = arith.constant dense<0.000000e+00> : vector<16x32xf32>
    %39 = tpu.matmul %37, %38, %cst_12 {dimension_numbers = #tpu.dot_dimension_numbers<[1], [0], [0], [1], [0, 0, 1, 1], [], []>} : vector<16x8xf32>, vector<8x32xf32>, vector<16x32xf32> -> vector<16x32xf32>
    %40 = arith.addf %17, %39 : vector<16x32xf32>
    %41 = vector.extract_strided_slice %14 {offsets = [0, 0, 8], sizes = [2, 8, 8], strides = [1, 1, 1]} : vector<2x8x96xf32> to vector<2x8x8xf32>
    %42 = vector.extract_strided_slice %14 {offsets = [0, 0, 40], sizes = [2, 8, 8], strides = [1, 1, 1]} : vector<2x8x96xf32> to vector<2x8x8xf32>
    %43 = vector.extract_strided_slice %14 {offsets = [0, 0, 72], sizes = [2, 8, 8], strides = [1, 1, 1]} : vector<2x8x96xf32> to vector<2x8x8xf32>
    "tpu.trace_start"() <{level = 10 : i32, message = "bqd,bkd->bqk"}> : () -> ()
    %cst_13 = arith.constant dense<0.000000e+00> : vector<2x8x8xf32>
    %44 = tpu.matmul %41, %42, %cst_13 {dimension_numbers = #tpu.dot_dimension_numbers<[2], [2], [1], [1], [0, 0, 0, 1, 1, 1], [0], [0]>} : vector<2x8x8xf32>, vector<2x8x8xf32>, vector<2x8x8xf32> -> vector<2x8x8xf32>
    "tpu.trace_stop"() : () -> ()
    %cst_14 = arith.constant dense<0xFF800000> : vector<2x8xf32>
    %45 = vector.multi_reduction <maximumf>, %44, %cst_14 [1] : vector<2x8x8xf32> to vector<2x8xf32>
    %46 = vector.shape_cast %45 : vector<2x8xf32> to vector<2x1x8xf32>
    %47 = vector.broadcast %46 : vector<2x1x8xf32> to vector<2x8x8xf32>
    %48 = arith.subf %44, %47 : vector<2x8x8xf32>
    %49 = math.exp %48 : vector<2x8x8xf32>
    %cst_15 = arith.constant dense<0.000000e+00> : vector<2x8xf32>
    %50 = vector.multi_reduction <add>, %49, %cst_15 [1] : vector<2x8x8xf32> to vector<2x8xf32>
    %51 = vector.shape_cast %50 : vector<2x8xf32> to vector<2x1x8xf32>
    %52 = tpu.reciprocal %51 {approx = true} : vector<2x1x8xf32> -> vector<2x1x8xf32>
    %53 = arith.mulf %51, %52 : vector<2x1x8xf32>
    %cst_16 = arith.constant 2.000000e+00 : f32
    %54 = vector.broadcast %cst_16 : f32 to vector<2x1x8xf32>
    %55 = arith.subf %54, %53 : vector<2x1x8xf32>
    %56 = arith.mulf %52, %55 : vector<2x1x8xf32>
    %57 = vector.broadcast %56 : vector<2x1x8xf32> to vector<2x8x8xf32>
    %58 = arith.mulf %49, %57 : vector<2x8x8xf32>
    "tpu.trace_start"() <{level = 10 : i32, message = "bqk,bkd->bqd"}> : () -> ()
    %cst_17 = arith.constant dense<0.000000e+00> : vector<2x8x8xf32>
    %59 = tpu.matmul %58, %43, %cst_17 {dimension_numbers = #tpu.dot_dimension_numbers<[2], [1], [1], [2], [0, 0, 0, 1, 1, 2], [0], [0]>} : vector<2x8x8xf32>, vector<2x8x8xf32>, vector<2x8x8xf32> -> vector<2x8x8xf32>
    "tpu.trace_stop"() : () -> ()
    %60 = vector.shape_cast %59 : vector<2x8x8xf32> to vector<16x8xf32>
    %61 = vector.extract_strided_slice %15 {offsets = [8, 0], sizes = [8, 32], strides = [1, 1]} : vector<32x32xf32> to vector<8x32xf32>
    %cst_18 = arith.constant dense<0.000000e+00> : vector<16x32xf32>
    %62 = tpu.matmul %60, %61, %cst_18 {dimension_numbers = #tpu.dot_dimension_numbers<[1], [0], [0], [1], [0, 0, 1, 1], [], []>} : vector<16x8xf32>, vector<8x32xf32>, vector<16x32xf32> -> vector<16x32xf32>
    %63 = arith.addf %40, %62 : vector<16x32xf32>
    %64 = vector.extract_strided_slice %14 {offsets = [0, 0, 16], sizes = [2, 8, 8], strides = [1, 1, 1]} : vector<2x8x96xf32> to vector<2x8x8xf32>
    %65 = vector.extract_strided_slice %14 {offsets = [0, 0, 48], sizes = [2, 8, 8], strides = [1, 1, 1]} : vector<2x8x96xf32> to vector<2x8x8xf32>
    %66 = vector.extract_strided_slice %14 {offsets = [0, 0, 80], sizes = [2, 8, 8], strides = [1, 1, 1]} : vector<2x8x96xf32> to vector<2x8x8xf32>
    "tpu.trace_start"() <{level = 10 : i32, message = "bqd,bkd->bqk"}> : () -> ()
    %cst_19 = arith.constant dense<0.000000e+00> : vector<2x8x8xf32>
    %67 = tpu.matmul %64, %65, %cst_19 {dimension_numbers = #tpu.dot_dimension_numbers<[2], [2], [1], [1], [0, 0, 0, 1, 1, 1], [0], [0]>} : vector<2x8x8xf32>, vector<2x8x8xf32>, vector<2x8x8xf32> -> vector<2x8x8xf32>
    "tpu.trace_stop"() : () -> ()
    %cst_20 = arith.constant dense<0xFF800000> : vector<2x8xf32>
    %68 = vector.multi_reduction <maximumf>, %67, %cst_20 [1] : vector<2x8x8xf32> to vector<2x8xf32>
    %69 = vector.shape_cast %68 : vector<2x8xf32> to vector<2x1x8xf32>
    %70 = vector.broadcast %69 : vector<2x1x8xf32> to vector<2x8x8xf32>
    %71 = arith.subf %67, %70 : vector<2x8x8xf32>
    %72 = math.exp %71 : vector<2x8x8xf32>
    %cst_21 = arith.constant dense<0.000000e+00> : vector<2x8xf32>
    %73 = vector.multi_reduction <add>, %72, %cst_21 [1] : vector<2x8x8xf32> to vector<2x8xf32>
    %74 = vector.shape_cast %73 : vector<2x8xf32> to vector<2x1x8xf32>
    %75 = tpu.reciprocal %74 {approx = true} : vector<2x1x8xf32> -> vector<2x1x8xf32>
    %76 = arith.mulf %74, %75 : vector<2x1x8xf32>
    %cst_22 = arith.constant 2.000000e+00 : f32
    %77 = vector.broadcast %cst_22 : f32 to vector<2x1x8xf32>
    %78 = arith.subf %77, %76 : vector<2x1x8xf32>
    %79 = arith.mulf %75, %78 : vector<2x1x8xf32>
    %80 = vector.broadcast %79 : vector<2x1x8xf32> to vector<2x8x8xf32>
    %81 = arith.mulf %72, %80 : vector<2x8x8xf32>
    "tpu.trace_start"() <{level = 10 : i32, message = "bqk,bkd->bqd"}> : () -> ()
    %cst_23 = arith.constant dense<0.000000e+00> : vector<2x8x8xf32>
    %82 = tpu.matmul %81, %66, %cst_23 {dimension_numbers = #tpu.dot_dimension_numbers<[2], [1], [1], [2], [0, 0, 0, 1, 1, 2], [0], [0]>} : vector<2x8x8xf32>, vector<2x8x8xf32>, vector<2x8x8xf32> -> vector<2x8x8xf32>
    "tpu.trace_stop"() : () -> ()
    %83 = vector.shape_cast %82 : vector<2x8x8xf32> to vector<16x8xf32>
    %84 = vector.extract_strided_slice %15 {offsets = [16, 0], sizes = [8, 32], strides = [1, 1]} : vector<32x32xf32> to vector<8x32xf32>
    %cst_24 = arith.constant dense<0.000000e+00> : vector<16x32xf32>
    %85 = tpu.matmul %83, %84, %cst_24 {dimension_numbers = #tpu.dot_dimension_numbers<[1], [0], [0], [1], [0, 0, 1, 1], [], []>} : vector<16x8xf32>, vector<8x32xf32>, vector<16x32xf32> -> vector<16x32xf32>
    %86 = arith.addf %63, %85 : vector<16x32xf32>
    %87 = vector.extract_strided_slice %14 {offsets = [0, 0, 24], sizes = [2, 8, 8], strides = [1, 1, 1]} : vector<2x8x96xf32> to vector<2x8x8xf32>
    %88 = vector.extract_strided_slice %14 {offsets = [0, 0, 56], sizes = [2, 8, 8], strides = [1, 1, 1]} : vector<2x8x96xf32> to vector<2x8x8xf32>
    %89 = vector.extract_strided_slice %14 {offsets = [0, 0, 88], sizes = [2, 8, 8], strides = [1, 1, 1]} : vector<2x8x96xf32> to vector<2x8x8xf32>
    "tpu.trace_start"() <{level = 10 : i32, message = "bqd,bkd->bqk"}> : () -> ()
    %cst_25 = arith.constant dense<0.000000e+00> : vector<2x8x8xf32>
    %90 = tpu.matmul %87, %88, %cst_25 {dimension_numbers = #tpu.dot_dimension_numbers<[2], [2], [1], [1], [0, 0, 0, 1, 1, 1], [0], [0]>} : vector<2x8x8xf32>, vector<2x8x8xf32>, vector<2x8x8xf32> -> vector<2x8x8xf32>
    "tpu.trace_stop"() : () -> ()
    %cst_26 = arith.constant dense<0xFF800000> : vector<2x8xf32>
    %91 = vector.multi_reduction <maximumf>, %90, %cst_26 [1] : vector<2x8x8xf32> to vector<2x8xf32>
    %92 = vector.shape_cast %91 : vector<2x8xf32> to vector<2x1x8xf32>
    %93 = vector.broadcast %92 : vector<2x1x8xf32> to vector<2x8x8xf32>
    %94 = arith.subf %90, %93 : vector<2x8x8xf32>
    %95 = math.exp %94 : vector<2x8x8xf32>
    %cst_27 = arith.constant dense<0.000000e+00> : vector<2x8xf32>
    %96 = vector.multi_reduction <add>, %95, %cst_27 [1] : vector<2x8x8xf32> to vector<2x8xf32>
    %97 = vector.shape_cast %96 : vector<2x8xf32> to vector<2x1x8xf32>
    %98 = tpu.reciprocal %97 {approx = true} : vector<2x1x8xf32> -> vector<2x1x8xf32>
    %99 = arith.mulf %97, %98 : vector<2x1x8xf32>
    %cst_28 = arith.constant 2.000000e+00 : f32
    %100 = vector.broadcast %cst_28 : f32 to vector<2x1x8xf32>
    %101 = arith.subf %100, %99 : vector<2x1x8xf32>
    %102 = arith.mulf %98, %101 : vector<2x1x8xf32>
    %103 = vector.broadcast %102 : vector<2x1x8xf32> to vector<2x8x8xf32>
    %104 = arith.mulf %95, %103 : vector<2x8x8xf32>
    "tpu.trace_start"() <{level = 10 : i32, message = "bqk,bkd->bqd"}> : () -> ()
    %cst_29 = arith.constant dense<0.000000e+00> : vector<2x8x8xf32>
    %105 = tpu.matmul %104, %89, %cst_29 {dimension_numbers = #tpu.dot_dimension_numbers<[2], [1], [1], [2], [0, 0, 0, 1, 1, 2], [0], [0]>} : vector<2x8x8xf32>, vector<2x8x8xf32>, vector<2x8x8xf32> -> vector<2x8x8xf32>
    "tpu.trace_stop"() : () -> ()
    %106 = vector.shape_cast %105 : vector<2x8x8xf32> to vector<16x8xf32>
    %107 = vector.extract_strided_slice %15 {offsets = [24, 0], sizes = [8, 32], strides = [1, 1]} : vector<32x32xf32> to vector<8x32xf32>
    %cst_30 = arith.constant dense<0.000000e+00> : vector<16x32xf32>
    %108 = tpu.matmul %106, %107, %cst_30 {dimension_numbers = #tpu.dot_dimension_numbers<[1], [0], [0], [1], [0, 0, 1, 1], [], []>} : vector<16x8xf32>, vector<8x32xf32>, vector<16x32xf32> -> vector<16x32xf32>
    %109 = arith.addf %86, %108 : vector<16x32xf32>
    %cst_31 = arith.constant dense<0.000000e+00> : vector<16xf32>
    %110 = vector.multi_reduction <add>, %109, %cst_31 [1] : vector<16x32xf32> to vector<16xf32>
    %111 = vector.shape_cast %110 : vector<16xf32> to vector<16x1xf32>
    %cst_32 = arith.constant 3.200000e+01 : f32
    %112 = vector.broadcast %cst_32 : f32 to vector<16x1xf32>
    %113 = arith.divf %111, %112 : vector<16x1xf32>
    %114 = vector.broadcast %113 : vector<16x1xf32> to vector<16x32xf32>
    %115 = arith.subf %109, %114 : vector<16x32xf32>
    %116 = arith.mulf %115, %115 : vector<16x32xf32>
    %cst_33 = arith.constant dense<0.000000e+00> : vector<16xf32>
    %117 = vector.multi_reduction <add>, %116, %cst_33 [1] : vector<16x32xf32> to vector<16xf32>
    %118 = vector.shape_cast %117 : vector<16xf32> to vector<16x1xf32>
    %cst_34 = arith.constant 3.200000e+01 : f32
    %119 = vector.broadcast %cst_34 : f32 to vector<16x1xf32>
    %120 = arith.divf %118, %119 : vector<16x1xf32>
    %121 = vector.broadcast %113 : vector<16x1xf32> to vector<16x32xf32>
    %122 = arith.subf %109, %121 : vector<16x32xf32>
    %cst_35 = arith.constant 9.99999974E-6 : f32
    %123 = vector.broadcast %cst_35 : f32 to vector<16x1xf32>
    %124 = arith.addf %120, %123 : vector<16x1xf32>
    %125 = math.rsqrt %124 : vector<16x1xf32>
    %126 = vector.broadcast %125 : vector<16x1xf32> to vector<16x32xf32>
    %127 = arith.mulf %122, %126 : vector<16x32xf32>
    %128 = vector.broadcast %6 : vector<1x32xf32> to vector<16x32xf32>
    %129 = arith.mulf %127, %128 : vector<16x32xf32>
    %130 = vector.broadcast %7 : vector<1x32xf32> to vector<16x32xf32>
    %131 = arith.addf %129, %130 : vector<16x32xf32>
    %c0_36 = arith.constant 0 : index
    %c0_37 = arith.constant 0 : index
    %132 = vector.load %arg4[%c0_36, %c0_37] : memref<32x64xf32, #tpu.memory_space<vmem>>, vector<32x64xf32>
    %cst_38 = arith.constant dense<0.000000e+00> : vector<16x64xf32>
    %133 = tpu.matmul %131, %132, %cst_38 {dimension_numbers = #tpu.dot_dimension_numbers<[1], [0], [0], [1], [0, 0, 1, 1], [], []>} : vector<16x32xf32>, vector<32x64xf32>, vector<16x64xf32> -> vector<16x64xf32>
    %134 = vector.broadcast %4 : vector<1x64xf32> to vector<16x64xf32>
    %135 = arith.addf %133, %134 : vector<16x64xf32>
    %cst_39 = arith.constant 5.000000e-01 : f32
    %136 = vector.broadcast %cst_39 : f32 to vector<16x64xf32>
    %137 = arith.mulf %136, %135 : vector<16x64xf32>
    %cst_40 = arith.constant 0.707106769 : f32
    %138 = vector.broadcast %cst_40 : f32 to vector<16x64xf32>
    %139 = arith.mulf %135, %138 : vector<16x64xf32>
    %140 = math.erf %139 : vector<16x64xf32>
    %cst_41 = arith.constant 1.000000e+00 : f32
    %141 = vector.broadcast %cst_41 : f32 to vector<16x64xf32>
    %142 = arith.addf %141, %140 : vector<16x64xf32>
    %143 = arith.mulf %137, %142 : vector<16x64xf32>
    %c0_42 = arith.constant 0 : index
    %c0_43 = arith.constant 0 : index
    %144 = vector.load %arg5[%c0_42, %c0_43] : memref<64x32xf32, #tpu.memory_space<vmem>>, vector<64x32xf32>
    %cst_44 = arith.constant dense<0.000000e+00> : vector<16x32xf32>
    %145 = tpu.matmul %143, %144, %cst_44 {dimension_numbers = #tpu.dot_dimension_numbers<[1], [0], [0], [1], [0, 0, 1, 1], [], []>} : vector<16x64xf32>, vector<64x32xf32>, vector<16x32xf32> -> vector<16x32xf32>
    %146 = vector.broadcast %5 : vector<1x32xf32> to vector<16x32xf32>
    %147 = arith.addf %145, %146 : vector<16x32xf32>
    %148 = arith.addf %147, %131 : vector<16x32xf32>
    %cst_45 = arith.constant dense<0.000000e+00> : vector<16xf32>
    %149 = vector.multi_reduction <add>, %148, %cst_45 [1] : vector<16x32xf32> to vector<16xf32>
    %150 = vector.shape_cast %149 : vector<16xf32> to vector<16x1xf32>
    %cst_46 = arith.constant 3.200000e+01 : f32
    %151 = vector.broadcast %cst_46 : f32 to vector<16x1xf32>
    %152 = arith.divf %150, %151 : vector<16x1xf32>
    %153 = vector.broadcast %152 : vector<16x1xf32> to vector<16x32xf32>
    %154 = arith.subf %148, %153 : vector<16x32xf32>
    %155 = arith.mulf %154, %154 : vector<16x32xf32>
    %cst_47 = arith.constant dense<0.000000e+00> : vector<16xf32>
    %156 = vector.multi_reduction <add>, %155, %cst_47 [1] : vector<16x32xf32> to vector<16xf32>
    %157 = vector.shape_cast %156 : vector<16xf32> to vector<16x1xf32>
    %cst_48 = arith.constant 3.200000e+01 : f32
    %158 = vector.broadcast %cst_48 : f32 to vector<16x1xf32>
    %159 = arith.divf %157, %158 : vector<16x1xf32>
    %160 = vector.broadcast %152 : vector<16x1xf32> to vector<16x32xf32>
    %161 = arith.subf %148, %160 : vector<16x32xf32>
    %cst_49 = arith.constant 9.99999974E-6 : f32
    %162 = vector.broadcast %cst_49 : f32 to vector<16x1xf32>
    %163 = arith.addf %159, %162 : vector<16x1xf32>
    %164 = math.rsqrt %163 : vector<16x1xf32>
    %165 = vector.broadcast %164 : vector<16x1xf32> to vector<16x32xf32>
    %166 = arith.mulf %161, %165 : vector<16x32xf32>
    %167 = vector.broadcast %8 : vector<1x32xf32> to vector<16x32xf32>
    %168 = arith.mulf %166, %167 : vector<16x32xf32>
    %169 = vector.broadcast %9 : vector<1x32xf32> to vector<16x32xf32>
    %170 = arith.addf %168, %169 : vector<16x32xf32>
    %c0_50 = arith.constant 0 : index
    %c0_51 = arith.constant 0 : index
    %171 = vector.load %arg7[%c0_50, %c0_51] : memref<16x32xf32, #tpu.memory_space<vmem>>, vector<16x32xf32>
    tpu.vector_store %arg7[%c0_50, %c0_51], %170 {strides = array<i32>} : memref<16x32xf32, #tpu.memory_space<vmem>>, vector<16x32xf32>,
    return
  }
  func.func @transform_0(%arg0: i32) -> (i32, i32) {
    %c0_i32 = arith.constant 0 : i32
    %c0_i32_0 = arith.constant 0 : i32
    return %arg0, %c0_i32 : i32, i32
  }
  func.func @transform_1(%arg0: i32) -> (i32, i32) {
    %c0_i32 = arith.constant 0 : i32
    %c0_i32_0 = arith.constant 0 : i32
    %c0_i32_1 = arith.constant 0 : i32
    return %c0_i32, %c0_i32_0 : i32, i32
  }
  func.func @transform_2(%arg0: i32) -> (i32, i32) {
    %c0_i32 = arith.constant 0 : i32
    %c0_i32_0 = arith.constant 0 : i32
    %c0_i32_1 = arith.constant 0 : i32
    return %c0_i32, %c0_i32_0 : i32, i32
  }
  func.func @transform_3(%arg0: i32) -> (i32, i32) {
    %c0_i32 = arith.constant 0 : i32
    %c0_i32_0 = arith.constant 0 : i32
    %c0_i32_1 = arith.constant 0 : i32
    return %c0_i32, %c0_i32_0 : i32, i32
  }
  func.func @transform_4(%arg0: i32) -> (i32, i32) {
    %c0_i32 = arith.constant 0 : i32
    %c0_i32_0 = arith.constant 0 : i32
    %c0_i32_1 = arith.constant 0 : i32
    return %c0_i32, %c0_i32_0 : i32, i32
  }
  func.func @transform_5(%arg0: i32) -> (i32, i32) {
    %c0_i32 = arith.constant 0 : i32
    %c0_i32_0 = arith.constant 0 : i32
    %c0_i32_1 = arith.constant 0 : i32
    return %c0_i32, %c0_i32_0 : i32, i32
  }
  func.func @transform_6(%arg0: i32) -> (i32, i32) {
    %c0_i32 = arith.constant 0 : i32
    %c0_i32_0 = arith.constant 0 : i32
    return %arg0, %c0_i32 : i32, i32
  }
}

</mosaic_0001>

<llo_original>
// kernel: tpu_custom_call.1
$region0: #{tpu_custom_call.1}
  #allocation0 [shape = 'u32[]', space=smem, size = 0x4, offset = 0x4, fixed_abs, tag = 'smem constant byte address 0x4 - core index']
  #allocation1 [shape = 'u32[72,128]{1,0:T(1,128)}', space=vmem, size = 0x9000, scoped, tag = 'internal scratch']
  %s0 = inlined_call_operand.hbm [shape: f32[16,32], index: 0, kind: input, shape index: {}]
  %s1 = inlined_call_operand.vmem [shape: f32[32,96], index: 1, kind: input, shape index: {}]
  %s2 = inlined_call_operand.vmem [shape: f32[32,32], index: 2, kind: input, shape index: {}]
  %s3 = inlined_call_operand.vmem [shape: f32[32,64], index: 3, kind: input, shape index: {}]
  %s4 = inlined_call_operand.vmem [shape: f32[64,32], index: 4, kind: input, shape index: {}]
  %s5 = inlined_call_operand.hbm [shape: f32[8,96], index: 5, kind: input, shape index: {}]
  %s6 = inlined_call_operand.hbm [shape: f32[16,32], index: 6, kind: output, shape index: {}]
  %s7 = sld [smem:[#allocation0]]
  $region42: #{tpu_custom_call.1} parent=0
    _
  %s9 = ssub.s32 1, %s7
  %s10 = scalar_select 0, %s9, %s7
  $region1: #{tpu_custom_call.1} parent=0
    #allocation2 [shape = 'u8[8192]{0}', space=vmem, size = 0x2000, scoped, tag = 'input window, operand 0, single buffered']
    #allocation3 [shape = 's32[1]{0}', space=sflag, size = 0x4, scoped, tag = 'scoped memory for tpu_custom_call.1']
    #allocation4 [shape = 's32[1]{0}', space=sflag, size = 0x4, scoped, tag = 'scoped memory for tpu_custom_call.1']
    #allocation5 [shape = 'u8[4096]{0}', space=vmem, size = 0x1000, scoped, tag = 'input window, operand 5, single buffered']
    #allocation6 [shape = 's32[1]{0}', space=sflag, size = 0x4, scoped, tag = 'scoped memory for tpu_custom_call.1']
    #allocation7 [shape = 'u8[8192]{0}', space=vmem, size = 0x2000, scoped, tag = 'output window, operand 0, single buffered']
    %11 = vsyncpa [#allocation3], 0
    %12 = vsyncpa [#allocation6], 0
    %13 = vsyncpa [#allocation4], 0
    // Predicated region
    $region2: #{tpu_custom_call.1} parent=1 // pred_check
      _
    $region3: #{tpu_custom_call.1} parent=1 // pred_check_branch
      %15 = sbr.rel (0) target = $region5
    $region4: #{tpu_custom_call.1} parent=1 // pred_region
      %17 = vsyncadd [#allocation3], 0
      %s18 = sshll.u32 %s0, 4
      %s19 = int_to_ptr.hbm [resolvable:$true] %s18
      %s20 = sshll.u32 [#allocation2], 4
      %s21 = int_to_ptr.vmem [resolvable:$true] %s20
      %26 = dma.hbm_to_vmem [thread:$0]  %s19, 256, %s21, [#allocation3], 128, 128, 8
    $region5: #{tpu_custom_call.1} parent=1 // pred_fallthru
      _
    // Predicated region
    $region6: #{tpu_custom_call.1} parent=1 // pred_check
      _
    $region7: #{tpu_custom_call.1} parent=1 // pred_check_branch
      %28 = sbr.rel (0) target = $region9
    $region8: #{tpu_custom_call.1} parent=1 // pred_region
      _
    $region9: #{tpu_custom_call.1} parent=1 // pred_fallthru
      _
    // Predicated region
    $region10: #{tpu_custom_call.1} parent=1 // pred_check
      _
    $region11: #{tpu_custom_call.1} parent=1 // pred_check_branch
      %30 = sbr.rel (0) target = $region13
    $region12: #{tpu_custom_call.1} parent=1 // pred_region
      _
    $region13: #{tpu_custom_call.1} parent=1 // pred_fallthru
      _
    // Predicated region
    $region14: #{tpu_custom_call.1} parent=1 // pred_check
      _
    $region15: #{tpu_custom_call.1} parent=1 // pred_check_branch
      %32 = sbr.rel (0) target = $region17
    $region16: #{tpu_custom_call.1} parent=1 // pred_region
      _
    $region17: #{tpu_custom_call.1} parent=1 // pred_fallthru
      _
    // Predicated region
    $region18: #{tpu_custom_call.1} parent=1 // pred_check
      _
    $region19: #{tpu_custom_call.1} parent=1 // pred_check_branch
      %34 = sbr.rel (0) target = $region21
    $region20: #{tpu_custom_call.1} parent=1 // pred_region
      _
    $region21: #{tpu_custom_call.1} parent=1 // pred_fallthru
      _
    // Predicated region
    $region22: #{tpu_custom_call.1} parent=1 // pred_check
      _
    $region23: #{tpu_custom_call.1} parent=1 // pred_check_branch
      %36 = sbr.rel (0) target = $region25
    $region24: #{tpu_custom_call.1} parent=1 // pred_region
      %38 = vsyncadd [#allocation6], 0
      %s40 = sshll.u32 %s5, 4
      %s41 = int_to_ptr.hbm [resolvable:$true] %s40
      %s42 = sshll.u32 [#allocation5], 4
      %s43 = int_to_ptr.vmem [resolvable:$true] %s42
      %45 = dma.hbm_to_vmem [thread:$0]  %s41, 128, %s43, [#allocation6]
    $region25: #{tpu_custom_call.1} parent=1 // pred_fallthru
      _
    // Predicated region
    $region26: #{tpu_custom_call.1} parent=1 // pred_check
      _
    $region27: #{tpu_custom_call.1} parent=1 // pred_check_branch
      %47 = sbr.rel (0) target = $region29
    $region28: #{tpu_custom_call.1} parent=1 // pred_region
      %49 = dma.done [#allocation3], 256
    $region29: #{tpu_custom_call.1} parent=1 // pred_fallthru
      _
    // Predicated region
    $region30: #{tpu_custom_call.1} parent=1 // pred_check
      _
    $region31: #{tpu_custom_call.1} parent=1 // pred_check_branch
      %51 = sbr.rel (0) target = $region33
    $region32: #{tpu_custom_call.1} parent=1 // pred_region
      %53 = dma.done [#allocation6], 128
    $region33: #{tpu_custom_call.1} parent=1 // pred_fallthru
      _
    %v54 = vld [vmem:[#allocation2] sm:$0xff]
    %v55 = vld [vmem:[#allocation2 + $0x8] sm:$0xff]
    %v56 = vld [vmem:[#allocation5] sm:$0xff]
    %v57 = vld [vmem:[%s1] sm:$0xff]
    %v58 = vld [vmem:[%s1 + $0x8] sm:$0xff]
    %v59 = vld [vmem:[%s1 + $0x10] sm:$0xff]
    %v60 = vld [vmem:[%s1 + $0x18] sm:$0xff]
    %v61 = vperm.slane %v56, 0
    %vm62 = vcmask 261120
    %v64 = vsel %vm62, %v54, 0
    %v67 = vsel %vm62, %v55, 0
    %69 = vmatpush.msra.mxu0 0.0
    %70 = vmatpush.msra.mxu0 0.0
    %71 = vmatpush.msra.mxu0 0.0
    %72 = vmatpush.msra.mxu0 0.0
    %73 = vmatpush.msra.mxu0 0.0
    %74 = vmatpush.msra.mxu0 0.0
    %75 = vmatpush.msra.mxu0 0.0
    %76 = vmatpush.msra.mxu0 0.0
    %77 = vmatpush.msra.mxu0 0.0
    %78 = vmatpush.msra.mxu0 0.0
    %79 = vmatpush.msra.mxu0 0.0
    %80 = vmatpush.msra.mxu0 0.0
    %81 = vmatpush.msra.mxu0 %v60
    %82 = vmatpush.msra.mxu0 %v59
    %83 = vmatpush.msra.mxu0 %v58
    %84 = vmatpush.msra.mxu0 %v57
    %85 = vmatmul.f32.gmra.mxu0 %v64
    %v86 = vpop.f32.mrf.mxu0
    %v87 = vadd.f32 %v61, %v86
    %88 = vmatmul.f32.gmra.mxu0 %v67
    %v89 = vpop.f32.mrf.mxu0
    %v90 = vadd.f32 %v61, %v89
    %91 = vdwg.mxu0
    %v92 = vld [vmem:[%s2] sm:$0xff]
    %v93 = vld [vmem:[%s2 + $0x8] sm:$0xff]
    %v94 = vld [vmem:[%s2 + $0x10] sm:$0xff]
    %v95 = vld [vmem:[%s2 + $0x18] sm:$0xff]
    %v96 = vperm.slane %v56, 1
    %v97 = vadd.f32 %v54, %v96
    %v98 = vadd.f32 %v55, %v96
    %100 = vrot.lane.b32.xlu0 %v87, 96
    %v101 = vpop.permute.xlu0 %100
    %vm102 = vcmask 64512
    %v103 = vsel %vm102, %v87, 0
    %v105 = vsel %vm102, %v101, 0
    %107 = vmatpush.xpose.msra.mxu0 0.0
    %108 = vmatpush.xpose.msra.mxu0 0.0
    %109 = vmatpush.xpose.msra.mxu0 0.0
    %110 = vmatpush.xpose.msra.mxu0 0.0
    %111 = vmatpush.xpose.msra.mxu0 0.0
    %112 = vmatpush.xpose.msra.mxu0 0.0
    %113 = vmatpush.xpose.msra.mxu0 0.0
    %114 = vmatpush.xpose.msra.mxu0 0.0
    %115 = vmatpush.xpose.msra.mxu0 0.0
    %116 = vmatpush.xpose.msra.mxu0 0.0
    %117 = vmatpush.xpose.msra.mxu0 0.0
    %118 = vmatpush.xpose.msra.mxu0 0.0
    %119 = vmatpush.xpose.msra.mxu0 0.0
    %120 = vmatpush.xpose.msra.mxu0 0.0
    %121 = vmatpush.xpose.msra.mxu0 0.0
    %122 = vmatpush.xpose.msra.mxu0 %v105
    %123 = vmatmul.f32.gmra.mxu0 %v103
    %v124 = vpop.f32.mrf.mxu0
    %v125 = vadd.f32 0.0, %v124
    %126 = vdwg.mxu0
    %128 = vrot.lane.b32.xlu0 %v90, 96
    %v129 = vpop.permute.xlu0 %128
    %v130 = vsel %vm102, %v90, 0
    %v132 = vsel %vm102, %v129, 0
    %134 = vmatpush.xpose.msra.mxu0 0.0
    %135 = vmatpush.xpose.msra.mxu0 0.0
    %136 = vmatpush.xpose.msra.mxu0 0.0
    %137 = vmatpush.xpose.msra.mxu0 0.0
    %138 = vmatpush.xpose.msra.mxu0 0.0
    %139 = vmatpush.xpose.msra.mxu0 0.0
    %140 = vmatpush.xpose.msra.mxu0 0.0
    %141 = vmatpush.xpose.msra.mxu0 0.0
    %142 = vmatpush.xpose.msra.mxu0 0.0
    %143 = vmatpush.xpose.msra.mxu0 0.0
    %144 = vmatpush.xpose.msra.mxu0 0.0
    %145 = vmatpush.xpose.msra.mxu0 0.0
    %146 = vmatpush.xpose.msra.mxu0 0.0
    %147 = vmatpush.xpose.msra.mxu0 0.0
    %148 = vmatpush.xpose.msra.mxu0 0.0
    %149 = vmatpush.xpose.msra.mxu0 %v132
    %150 = vmatmul.f32.gmra.mxu0 %v130
    %v151 = vpop.f32.mrf.mxu0
    %v152 = vadd.f32 0.0, %v151
    %153 = vdwg.mxu0
    %v154 = vsel %vm102, %v125, -inf
    %v155 = vrot.slane %v154, 4
    %v156 = vmax.f32 %v154, %v155
    %v157 = vrot.slane %v156, 2
    %v158 = vmax.f32 %v156, %v157
    %v159 = vrot.slane %v158, 1
    %v160 = vmax.f32 %v158, %v159
    %v161 = vsel %vm102, %v152, -inf
    %v162 = vrot.slane %v161, 4
    %v163 = vmax.f32 %v161, %v162
    %v164 = vrot.slane %v163, 2
    %v165 = vmax.f32 %v163, %v164
    %v166 = vrot.slane %v165, 1
    %v167 = vmax.f32 %v165, %v166
    %v168 = vsub.f32 %v125, %v160
    %v169 = vsub.f32 %v152, %v167
    %v170 = vmul.f32 %v168, 1.442695
    %v171 = vpow.pop %v170
    %v172 = vmul.f32 %v169, 1.442695
    %v173 = vpow.pop %v172
    %v174 = vsel %vm102, %v171, 0.0
    %v175 = vrot.slane %v174, 4
    %v176 = vadd.f32 %v174, %v175
    %v177 = vrot.slane %v176, 2
    %v178 = vadd.f32 %v176, %v177
    %v179 = vrot.slane %v178, 1
    %v180 = vadd.f32 %v178, %v179
    %v181 = vsel %vm102, %v173, 0.0
    %v182 = vrot.slane %v181, 4
    %v183 = vadd.f32 %v181, %v182
    %v184 = vrot.slane %v183, 2
    %v185 = vadd.f32 %v183, %v184
    %v186 = vrot.slane %v185, 1
    %v187 = vadd.f32 %v185, %v186
    %v188 = vrcp.pop %v180
    %v189 = vrcp.pop %v187
    %v190 = vmul.f32 %v180, %v188
    %v191 = vmul.f32 %v187, %v189
    %v192 = vsub.f32 2.0, %v190
    %v193 = vsub.f32 2.0, %v191
    %v194 = vmul.f32 %v188, %v192
    %v195 = vmul.f32 %v189, %v193
    %v196 = vmul.f32 %v171, %v194
    %v197 = vmul.f32 %v173, %v195
    %198 = vrot.lane.b32.xlu0 %v87, 64
    %v199 = vpop.permute.xlu0 %198
    %v202 = vsel %vm102, %v196, 0
    %204 = vmatpush.msra.mxu0 0.0
    %205 = vmatpush.msra.mxu0 0.0
    %206 = vmatpush.msra.mxu0 0.0
    %207 = vmatpush.msra.mxu0 0.0
    %208 = vmatpush.msra.mxu0 0.0
    %209 = vmatpush.msra.mxu0 0.0
    %210 = vmatpush.msra.mxu0 0.0
    %211 = vmatpush.msra.mxu0 0.0
    %212 = vmatpush.msra.mxu0 0.0
    %213 = vmatpush.msra.mxu0 0.0
    %214 = vmatpush.msra.mxu0 0.0
    %215 = vmatpush.msra.mxu0 0.0
    %216 = vmatpush.msra.mxu0 0.0
    %217 = vmatpush.msra.mxu0 0.0
    %218 = vmatpush.msra.mxu0 0.0
    %219 = vmatpush.msra.mxu0 %v199
    %220 = vmatmul.f32.gmra.mxu0 %v202
    %v221 = vpop.f32.mrf.mxu0
    %v222 = vadd.f32 0.0, %v221
    %223 = vdwg.mxu0
    %224 = vrot.lane.b32.xlu0 %v90, 64
    %v225 = vpop.permute.xlu0 %224
    %v228 = vsel %vm102, %v197, 0
    %230 = vmatpush.msra.mxu0 0.0
    %231 = vmatpush.msra.mxu0 0.0
    %232 = vmatpush.msra.mxu0 0.0
    %233 = vmatpush.msra.mxu0 0.0
    %234 = vmatpush.msra.mxu0 0.0
    %235 = vmatpush.msra.mxu0 0.0
    %236 = vmatpush.msra.mxu0 0.0
    %237 = vmatpush.msra.mxu0 0.0
    %238 = vmatpush.msra.mxu0 0.0
    %239 = vmatpush.msra.mxu0 0.0
    %240 = vmatpush.msra.mxu0 0.0
    %241 = vmatpush.msra.mxu0 0.0
    %242 = vmatpush.msra.mxu0 0.0
    %243 = vmatpush.msra.mxu0 0.0
    %244 = vmatpush.msra.mxu0 0.0
    %245 = vmatpush.msra.mxu0 %v225
    %246 = vmatmul.f32.gmra.mxu0 %v228
    %v247 = vpop.f32.mrf.mxu0
    %v248 = vadd.f32 0.0, %v247
    %249 = vdwg.mxu0
    %v251 = vsel %vm102, %v222, 0
    %v254 = vsel %vm102, %v248, 0
    %256 = vmatpush.msra.mxu0 0.0
    %257 = vmatpush.msra.mxu0 0.0
    %258 = vmatpush.msra.mxu0 0.0
    %259 = vmatpush.msra.mxu0 0.0
    %260 = vmatpush.msra.mxu0 0.0
    %261 = vmatpush.msra.mxu0 0.0
    %262 = vmatpush.msra.mxu0 0.0
    %263 = vmatpush.msra.mxu0 0.0
    %264 = vmatpush.msra.mxu0 0.0
    %265 = vmatpush.msra.mxu0 0.0
    %266 = vmatpush.msra.mxu0 0.0
    %267 = vmatpush.msra.mxu0 0.0
    %268 = vmatpush.msra.mxu0 0.0
    %269 = vmatpush.msra.mxu0 0.0
    %270 = vmatpush.msra.mxu0 0.0
    %271 = vmatpush.msra.mxu0 %v92
    %272 = vmatmul.f32.gmra.mxu0 %v251
    %v273 = vpop.f32.mrf.mxu0
    %v274 = vadd.f32 0.0, %v273
    %275 = vmatmul.f32.gmra.mxu0 %v254
    %v276 = vpop.f32.mrf.mxu0
    %v277 = vadd.f32 0.0, %v276
    %278 = vdwg.mxu0
    %v279 = vadd.f32 %v97, %v274
    %v280 = vadd.f32 %v98, %v277
    %281 = vrot.lane.b32.xlu0 %v87, 120
    %v282 = vpop.permute.xlu0 %281
    %283 = vrot.lane.b32.xlu0 %v87, 88
    %v284 = vpop.permute.xlu0 %283
    %v285 = vsel %vm102, %v282, 0
    %v287 = vsel %vm102, %v284, 0
    %289 = vmatpush.xpose.msra.mxu0 0.0
    %290 = vmatpush.xpose.msra.mxu0 0.0
    %291 = vmatpush.xpose.msra.mxu0 0.0
    %292 = vmatpush.xpose.msra.mxu0 0.0
    %293 = vmatpush.xpose.msra.mxu0 0.0
    %294 = vmatpush.xpose.msra.mxu0 0.0
    %295 = vmatpush.xpose.msra.mxu0 0.0
    %296 = vmatpush.xpose.msra.mxu0 0.0
    %297 = vmatpush.xpose.msra.mxu0 0.0
    %298 = vmatpush.xpose.msra.mxu0 0.0
    %299 = vmatpush.xpose.msra.mxu0 0.0
    %300 = vmatpush.xpose.msra.mxu0 0.0
    %301 = vmatpush.xpose.msra.mxu0 0.0
    %302 = vmatpush.xpose.msra.mxu0 0.0
    %303 = vmatpush.xpose.msra.mxu0 0.0
    %304 = vmatpush.xpose.msra.mxu0 %v287
    %305 = vmatmul.f32.gmra.mxu0 %v285
    %v306 = vpop.f32.mrf.mxu0
    %v307 = vadd.f32 0.0, %v306
    %308 = vdwg.mxu0
    %309 = vrot.lane.b32.xlu0 %v90, 120
    %v310 = vpop.permute.xlu0 %309
    %311 = vrot.lane.b32.xlu0 %v90, 88
    %v312 = vpop.permute.xlu0 %311
    %v313 = vsel %vm102, %v310, 0
    %v315 = vsel %vm102, %v312, 0
    %317 = vmatpush.xpose.msra.mxu0 0.0
    %318 = vmatpush.xpose.msra.mxu0 0.0
    %319 = vmatpush.xpose.msra.mxu0 0.0
    %320 = vmatpush.xpose.msra.mxu0 0.0
    %321 = vmatpush.xpose.msra.mxu0 0.0
    %322 = vmatpush.xpose.msra.mxu0 0.0
    %323 = vmatpush.xpose.msra.mxu0 0.0
    %324 = vmatpush.xpose.msra.mxu0 0.0
    %325 = vmatpush.xpose.msra.mxu0 0.0
    %326 = vmatpush.xpose.msra.mxu0 0.0
    %327 = vmatpush.xpose.msra.mxu0 0.0
    %328 = vmatpush.xpose.msra.mxu0 0.0
    %329 = vmatpush.xpose.msra.mxu0 0.0
    %330 = vmatpush.xpose.msra.mxu0 0.0
    %331 = vmatpush.xpose.msra.mxu0 0.0
    %332 = vmatpush.xpose.msra.mxu0 %v315
    %333 = vmatmul.f32.gmra.mxu0 %v313
    %v334 = vpop.f32.mrf.mxu0
    %v335 = vadd.f32 0.0, %v334
    %336 = vdwg.mxu0
    %v337 = vsel %vm102, %v307, -inf
    %v338 = vrot.slane %v337, 4
    %v339 = vmax.f32 %v337, %v338
    %v340 = vrot.slane %v339, 2
    %v341 = vmax.f32 %v339, %v340
    %v342 = vrot.slane %v341, 1
    %v343 = vmax.f32 %v341, %v342
    %v344 = vsel %vm102, %v335, -inf
    %v345 = vrot.slane %v344, 4
    %v346 = vmax.f32 %v344, %v345
    %v347 = vrot.slane %v346, 2
    %v348 = vmax.f32 %v346, %v347
    %v349 = vrot.slane %v348, 1
    %v350 = vmax.f32 %v348, %v349
    %v351 = vsub.f32 %v307, %v343
    %v352 = vsub.f32 %v335, %v350
    %v353 = vmul.f32 %v351, 1.442695
    %v354 = vpow.pop %v353
    %v355 = vmul.f32 %v352, 1.442695
    %v356 = vpow.pop %v355
    %v357 = vsel %vm102, %v354, 0.0
    %v358 = vrot.slane %v357, 4
    %v359 = vadd.f32 %v357, %v358
    %v360 = vrot.slane %v359, 2
    %v361 = vadd.f32 %v359, %v360
    %v362 = vrot.slane %v361, 1
    %v363 = vadd.f32 %v361, %v362
    %v364 = vsel %vm102, %v356, 0.0
    %v365 = vrot.slane %v364, 4
    %v366 = vadd.f32 %v364, %v365
    %v367 = vrot.slane %v366, 2
    %v368 = vadd.f32 %v366, %v367
    %v369 = vrot.slane %v368, 1
    %v370 = vadd.f32 %v368, %v369
    %v371 = vrcp.pop %v363
    %v372 = vrcp.pop %v370
    %v373 = vmul.f32 %v363, %v371
    %v374 = vmul.f32 %v370, %v372
    %v375 = vsub.f32 2.0, %v373
    %v376 = vsub.f32 2.0, %v374
    %v377 = vmul.f32 %v371, %v375
    %v378 = vmul.f32 %v372, %v376
    %v379 = vmul.f32 %v354, %v377
    %v380 = vmul.f32 %v356, %v378
    %381 = vrot.lane.b32.xlu0 %v87, 56
    %v382 = vpop.permute.xlu0 %381
    %v385 = vsel %vm102, %v379, 0
    %387 = vmatpush.msra.mxu0 0.0
    %388 = vmatpush.msra.mxu0 0.0
    %389 = vmatpush.msra.mxu0 0.0
    %390 = vmatpush.msra.mxu0 0.0
    %391 = vmatpush.msra.mxu0 0.0
    %392 = vmatpush.msra.mxu0 0.0
    %393 = vmatpush.msra.mxu0 0.0
    %394 = vmatpush.msra.mxu0 0.0
    %395 = vmatpush.msra.mxu0 0.0
    %396 = vmatpush.msra.mxu0 0.0
    %397 = vmatpush.msra.mxu0 0.0
    %398 = vmatpush.msra.mxu0 0.0
    %399 = vmatpush.msra.mxu0 0.0
    %400 = vmatpush.msra.mxu0 0.0
    %401 = vmatpush.msra.mxu0 0.0
    %402 = vmatpush.msra.mxu0 %v382
    %403 = vmatmul.f32.gmra.mxu0 %v385
    %v404 = vpop.f32.mrf.mxu0
    %v405 = vadd.f32 0.0, %v404
    %406 = vdwg.mxu0
    %407 = vrot.lane.b32.xlu0 %v90, 56
    %v408 = vpop.permute.xlu0 %407
    %v411 = vsel %vm102, %v380, 0
    %413 = vmatpush.msra.mxu0 0.0
    %414 = vmatpush.msra.mxu0 0.0
    %415 = vmatpush.msra.mxu0 0.0
    %416 = vmatpush.msra.mxu0 0.0
    %417 = vmatpush.msra.mxu0 0.0
    %418 = vmatpush.msra.mxu0 0.0
    %419 = vmatpush.msra.mxu0 0.0
    %420 = vmatpush.msra.mxu0 0.0
    %421 = vmatpush.msra.mxu0 0.0
    %422 = vmatpush.msra.mxu0 0.0
    %423 = vmatpush.msra.mxu0 0.0
    %424 = vmatpush.msra.mxu0 0.0
    %425 = vmatpush.msra.mxu0 0.0
    %426 = vmatpush.msra.mxu0 0.0
    %427 = vmatpush.msra.mxu0 0.0
    %428 = vmatpush.msra.mxu0 %v408
    %429 = vmatmul.f32.gmra.mxu0 %v411
    %v430 = vpop.f32.mrf.mxu0
    %v431 = vadd.f32 0.0, %v430
    %432 = vdwg.mxu0
    %v434 = vsel %vm102, %v405, 0
    %v437 = vsel %vm102, %v431, 0
    %439 = vmatpush.msra.mxu0 0.0
    %440 = vmatpush.msra.mxu0 0.0
    %441 = vmatpush.msra.mxu0 0.0
    %442 = vmatpush.msra.mxu0 0.0
    %443 = vmatpush.msra.mxu0 0.0
    %444 = vmatpush.msra.mxu0 0.0
    %445 = vmatpush.msra.mxu0 0.0
    %446 = vmatpush.msra.mxu0 0.0
    %447 = vmatpush.msra.mxu0 0.0
    %448 = vmatpush.msra.mxu0 0.0
    %449 = vmatpush.msra.mxu0 0.0
    %450 = vmatpush.msra.mxu0 0.0
    %451 = vmatpush.msra.mxu0 0.0
    %452 = vmatpush.msra.mxu0 0.0
    %453 = vmatpush.msra.mxu0 0.0
    %454 = vmatpush.msra.mxu0 %v93
    %455 = vmatmul.f32.gmra.mxu0 %v434
    %v456 = vpop.f32.mrf.mxu0
    %v457 = vadd.f32 0.0, %v456
    %458 = vmatmul.f32.gmra.mxu0 %v437
    %v459 = vpop.f32.mrf.mxu0
    %v460 = vadd.f32 0.0, %v459
    %461 = vdwg.mxu0
    %v462 = vadd.f32 %v279, %v457
    %v463 = vadd.f32 %v280, %v460
    %464 = vrot.lane.b32.xlu0 %v87, 112
    %v465 = vpop.permute.xlu0 %464
    %466 = vrot.lane.b32.xlu0 %v87, 80
    %v467 = vpop.permute.xlu0 %466
    %v468 = vsel %vm102, %v465, 0
    %v470 = vsel %vm102, %v467, 0
    %472 = vmatpush.xpose.msra.mxu0 0.0
    %473 = vmatpush.xpose.msra.mxu0 0.0
    %474 = vmatpush.xpose.msra.mxu0 0.0
    %475 = vmatpush.xpose.msra.mxu0 0.0
    %476 = vmatpush.xpose.msra.mxu0 0.0
    %477 = vmatpush.xpose.msra.mxu0 0.0
    %478 = vmatpush.xpose.msra.mxu0 0.0
    %479 = vmatpush.xpose.msra.mxu0 0.0
    %480 = vmatpush.xpose.msra.mxu0 0.0
    %481 = vmatpush.xpose.msra.mxu0 0.0
    %482 = vmatpush.xpose.msra.mxu0 0.0
    %483 = vmatpush.xpose.msra.mxu0 0.0
    %484 = vmatpush.xpose.msra.mxu0 0.0
    %485 = vmatpush.xpose.msra.mxu0 0.0
    %486 = vmatpush.xpose.msra.mxu0 0.0
    %487 = vmatpush.xpose.msra.mxu0 %v470
    %488 = vmatmul.f32.gmra.mxu0 %v468
    %v489 = vpop.f32.mrf.mxu0
    %v490 = vadd.f32 0.0, %v489
    %491 = vdwg.mxu0
    %492 = vrot.lane.b32.xlu0 %v90, 112
    %v493 = vpop.permute.xlu0 %492
    %494 = vrot.lane.b32.xlu0 %v90, 80
    %v495 = vpop.permute.xlu0 %494
    %v496 = vsel %vm102, %v493, 0
    %v498 = vsel %vm102, %v495, 0
    %500 = vmatpush.xpose.msra.mxu0 0.0
    %501 = vmatpush.xpose.msra.mxu0 0.0
    %502 = vmatpush.xpose.msra.mxu0 0.0
    %503 = vmatpush.xpose.msra.mxu0 0.0
    %504 = vmatpush.xpose.msra.mxu0 0.0
    %505 = vmatpush.xpose.msra.mxu0 0.0
    %506 = vmatpush.xpose.msra.mxu0 0.0
    %507 = vmatpush.xpose.msra.mxu0 0.0
    %508 = vmatpush.xpose.msra.mxu0 0.0
    %509 = vmatpush.xpose.msra.mxu0 0.0
    %510 = vmatpush.xpose.msra.mxu0 0.0
    %511 = vmatpush.xpose.msra.mxu0 0.0
    %512 = vmatpush.xpose.msra.mxu0 0.0
    %513 = vmatpush.xpose.msra.mxu0 0.0
    %514 = vmatpush.xpose.msra.mxu0 0.0
    %515 = vmatpush.xpose.msra.mxu0 %v498
    %516 = vmatmul.f32.gmra.mxu0 %v496
    %v517 = vpop.f32.mrf.mxu0
    %v518 = vadd.f32 0.0, %v517
    %519 = vdwg.mxu0
    %v520 = vsel %vm102, %v490, -inf
    %v521 = vrot.slane %v520, 4
    %v522 = vmax.f32 %v520, %v521
    %v523 = vrot.slane %v522, 2
    %v524 = vmax.f32 %v522, %v523
    %v525 = vrot.slane %v524, 1
    %v526 = vmax.f32 %v524, %v525
    %v527 = vsel %vm102, %v518, -inf
    %v528 = vrot.slane %v527, 4
    %v529 = vmax.f32 %v527, %v528
    %v530 = vrot.slane %v529, 2
    %v531 = vmax.f32 %v529, %v530
    %v532 = vrot.slane %v531, 1
    %v533 = vmax.f32 %v531, %v532
    %v534 = vsub.f32 %v490, %v526
    %v535 = vsub.f32 %v518, %v533
    %v536 = vmul.f32 %v534, 1.442695
    %v537 = vpow.pop %v536
    %v538 = vmul.f32 %v535, 1.442695
    %v539 = vpow.pop %v538
    %v540 = vsel %vm102, %v537, 0.0
    %v541 = vrot.slane %v540, 4
    %v542 = vadd.f32 %v540, %v541
    %v543 = vrot.slane %v542, 2
    %v544 = vadd.f32 %v542, %v543
    %v545 = vrot.slane %v544, 1
    %v546 = vadd.f32 %v544, %v545
    %v547 = vsel %vm102, %v539, 0.0
    %v548 = vrot.slane %v547, 4
    %v549 = vadd.f32 %v547, %v548
    %v550 = vrot.slane %v549, 2
    %v551 = vadd.f32 %v549, %v550
    %v552 = vrot.slane %v551, 1
    %v553 = vadd.f32 %v551, %v552
    %v554 = vrcp.pop %v546
    %v555 = vrcp.pop %v553
    %v556 = vmul.f32 %v546, %v554
    %v557 = vmul.f32 %v553, %v555
    %v558 = vsub.f32 2.0, %v556
    %v559 = vsub.f32 2.0, %v557
    %v560 = vmul.f32 %v554, %v558
    %v561 = vmul.f32 %v555, %v559
    %v562 = vmul.f32 %v537, %v560
    %v563 = vmul.f32 %v539, %v561
    %564 = vrot.lane.b32.xlu0 %v87, 48
    %v565 = vpop.permute.xlu0 %564
    %v568 = vsel %vm102, %v562, 0
    %570 = vmatpush.msra.mxu0 0.0
    %571 = vmatpush.msra.mxu0 0.0
    %572 = vmatpush.msra.mxu0 0.0
    %573 = vmatpush.msra.mxu0 0.0
    %574 = vmatpush.msra.mxu0 0.0
    %575 = vmatpush.msra.mxu0 0.0
    %576 = vmatpush.msra.mxu0 0.0
    %577 = vmatpush.msra.mxu0 0.0
    %578 = vmatpush.msra.mxu0 0.0
    %579 = vmatpush.msra.mxu0 0.0
    %580 = vmatpush.msra.mxu0 0.0
    %581 = vmatpush.msra.mxu0 0.0
    %582 = vmatpush.msra.mxu0 0.0
    %583 = vmatpush.msra.mxu0 0.0
    %584 = vmatpush.msra.mxu0 0.0
    %585 = vmatpush.msra.mxu0 %v565
    %586 = vmatmul.f32.gmra.mxu0 %v568
    %v587 = vpop.f32.mrf.mxu0
    %v588 = vadd.f32 0.0, %v587
    %589 = vdwg.mxu0
    %590 = vrot.lane.b32.xlu0 %v90, 48
    %v591 = vpop.permute.xlu0 %590
    %v594 = vsel %vm102, %v563, 0
    %596 = vmatpush.msra.mxu0 0.0
    %597 = vmatpush.msra.mxu0 0.0
    %598 = vmatpush.msra.mxu0 0.0
    %599 = vmatpush.msra.mxu0 0.0
    %600 = vmatpush.msra.mxu0 0.0
    %601 = vmatpush.msra.mxu0 0.0
    %602 = vmatpush.msra.mxu0 0.0
    %603 = vmatpush.msra.mxu0 0.0
    %604 = vmatpush.msra.mxu0 0.0
    %605 = vmatpush.msra.mxu0 0.0
    %606 = vmatpush.msra.mxu0 0.0
    %607 = vmatpush.msra.mxu0 0.0
    %608 = vmatpush.msra.mxu0 0.0
    %609 = vmatpush.msra.mxu0 0.0
    %610 = vmatpush.msra.mxu0 0.0
    %611 = vmatpush.msra.mxu0 %v591
    %612 = vmatmul.f32.gmra.mxu0 %v594
    %v613 = vpop.f32.mrf.mxu0
    %v614 = vadd.f32 0.0, %v613
    %615 = vdwg.mxu0
    %v617 = vsel %vm102, %v588, 0
    %v620 = vsel %vm102, %v614, 0
    %622 = vmatpush.msra.mxu0 0.0
    %623 = vmatpush.msra.mxu0 0.0
    %624 = vmatpush.msra.mxu0 0.0
    %625 = vmatpush.msra.mxu0 0.0
    %626 = vmatpush.msra.mxu0 0.0
    %627 = vmatpush.msra.mxu0 0.0
    %628 = vmatpush.msra.mxu0 0.0
    %629 = vmatpush.msra.mxu0 0.0
    %630 = vmatpush.msra.mxu0 0.0
    %631 = vmatpush.msra.mxu0 0.0
    %632 = vmatpush.msra.mxu0 0.0
    %633 = vmatpush.msra.mxu0 0.0
    %634 = vmatpush.msra.mxu0 0.0
    %635 = vmatpush.msra.mxu0 0.0
    %636 = vmatpush.msra.mxu0 0.0
    %637 = vmatpush.msra.mxu0 %v94
    %638 = vmatmul.f32.gmra.mxu0 %v617
    %v639 = vpop.f32.mrf.mxu0
    %v640 = vadd.f32 0.0, %v639
    %641 = vmatmul.f32.gmra.mxu0 %v620
    %v642 = vpop.f32.mrf.mxu0
    %v643 = vadd.f32 0.0, %v642
    %644 = vdwg.mxu0
    %v645 = vadd.f32 %v462, %v640
    %v646 = vadd.f32 %v463, %v643
    %647 = vrot.lane.b32.xlu0 %v87, 104
    %v648 = vpop.permute.xlu0 %647
    %649 = vrot.lane.b32.xlu0 %v87, 72
    %v650 = vpop.permute.xlu0 %649
    %v651 = vsel %vm102, %v648, 0
    %v653 = vsel %vm102, %v650, 0
    %655 = vmatpush.xpose.msra.mxu0 0.0
    %656 = vmatpush.xpose.msra.mxu0 0.0
    %657 = vmatpush.xpose.msra.mxu0 0.0
    %658 = vmatpush.xpose.msra.mxu0 0.0
    %659 = vmatpush.xpose.msra.mxu0 0.0
    %660 = vmatpush.xpose.msra.mxu0 0.0
    %661 = vmatpush.xpose.msra.mxu0 0.0
    %662 = vmatpush.xpose.msra.mxu0 0.0
    %663 = vmatpush.xpose.msra.mxu0 0.0
    %664 = vmatpush.xpose.msra.mxu0 0.0
    %665 = vmatpush.xpose.msra.mxu0 0.0
    %666 = vmatpush.xpose.msra.mxu0 0.0
    %667 = vmatpush.xpose.msra.mxu0 0.0
    %668 = vmatpush.xpose.msra.mxu0 0.0
    %669 = vmatpush.xpose.msra.mxu0 0.0
    %670 = vmatpush.xpose.msra.mxu0 %v653
    %671 = vmatmul.f32.gmra.mxu0 %v651
    %v672 = vpop.f32.mrf.mxu0
    %v673 = vadd.f32 0.0, %v672
    %674 = vdwg.mxu0
    %675 = vrot.lane.b32.xlu0 %v90, 104
    %v676 = vpop.permute.xlu0 %675
    %677 = vrot.lane.b32.xlu0 %v90, 72
    %v678 = vpop.permute.xlu0 %677
    %v679 = vsel %vm102, %v676, 0
    %v681 = vsel %vm102, %v678, 0
    %683 = vmatpush.xpose.msra.mxu0 0.0
    %684 = vmatpush.xpose.msra.mxu0 0.0
    %685 = vmatpush.xpose.msra.mxu0 0.0
    %686 = vmatpush.xpose.msra.mxu0 0.0
    %687 = vmatpush.xpose.msra.mxu0 0.0
    %688 = vmatpush.xpose.msra.mxu0 0.0
    %689 = vmatpush.xpose.msra.mxu0 0.0
    %690 = vmatpush.xpose.msra.mxu0 0.0
    %691 = vmatpush.xpose.msra.mxu0 0.0
    %692 = vmatpush.xpose.msra.mxu0 0.0
    %693 = vmatpush.xpose.msra.mxu0 0.0
    %694 = vmatpush.xpose.msra.mxu0 0.0
    %695 = vmatpush.xpose.msra.mxu0 0.0
    %696 = vmatpush.xpose.msra.mxu0 0.0
    %697 = vmatpush.xpose.msra.mxu0 0.0
    %698 = vmatpush.xpose.msra.mxu0 %v681
    %699 = vmatmul.f32.gmra.mxu0 %v679
    %v700 = vpop.f32.mrf.mxu0
    %v701 = vadd.f32 0.0, %v700
    %702 = vdwg.mxu0
    %v703 = vsel %vm102, %v673, -inf
    %v704 = vrot.slane %v703, 4
    %v705 = vmax.f32 %v703, %v704
    %v706 = vrot.slane %v705, 2
    %v707 = vmax.f32 %v705, %v706
    %v708 = vrot.slane %v707, 1
    %v709 = vmax.f32 %v707, %v708
    %v710 = vsel %vm102, %v701, -inf
    %v711 = vrot.slane %v710, 4
    %v712 = vmax.f32 %v710, %v711
    %v713 = vrot.slane %v712, 2
    %v714 = vmax.f32 %v712, %v713
    %v715 = vrot.slane %v714, 1
    %v716 = vmax.f32 %v714, %v715
    %v717 = vsub.f32 %v673, %v709
    %v718 = vsub.f32 %v701, %v716
    %v719 = vmul.f32 %v717, 1.442695
    %v720 = vpow.pop %v719
    %v721 = vmul.f32 %v718, 1.442695
    %v722 = vpow.pop %v721
    %v723 = vsel %vm102, %v720, 0.0
    %v724 = vrot.slane %v723, 4
    %v725 = vadd.f32 %v723, %v724
    %v726 = vrot.slane %v725, 2
    %v727 = vadd.f32 %v725, %v726
    %v728 = vrot.slane %v727, 1
    %v729 = vadd.f32 %v727, %v728
    %v730 = vsel %vm102, %v722, 0.0
    %v731 = vrot.slane %v730, 4
    %v732 = vadd.f32 %v730, %v731
    %v733 = vrot.slane %v732, 2
    %v734 = vadd.f32 %v732, %v733
    %v735 = vrot.slane %v734, 1
    %v736 = vadd.f32 %v734, %v735
    %v737 = vrcp.pop %v729
    %v738 = vrcp.pop %v736
    %v739 = vmul.f32 %v729, %v737
    %v740 = vmul.f32 %v736, %v738
    %v741 = vsub.f32 2.0, %v739
    %v742 = vsub.f32 2.0, %v740
    %v743 = vmul.f32 %v737, %v741
    %v744 = vmul.f32 %v738, %v742
    %v745 = vmul.f32 %v720, %v743
    %v746 = vmul.f32 %v722, %v744
    %747 = vrot.lane.b32.xlu0 %v87, 40
    %v748 = vpop.permute.xlu0 %747
    %v751 = vsel %vm102, %v745, 0
    %753 = vmatpush.msra.mxu0 0.0
    %754 = vmatpush.msra.mxu0 0.0
    %755 = vmatpush.msra.mxu0 0.0
    %756 = vmatpush.msra.mxu0 0.0
    %757 = vmatpush.msra.mxu0 0.0
    %758 = vmatpush.msra.mxu0 0.0
    %759 = vmatpush.msra.mxu0 0.0
    %760 = vmatpush.msra.mxu0 0.0
    %761 = vmatpush.msra.mxu0 0.0
    %762 = vmatpush.msra.mxu0 0.0
    %763 = vmatpush.msra.mxu0 0.0
    %764 = vmatpush.msra.mxu0 0.0
    %765 = vmatpush.msra.mxu0 0.0
    %766 = vmatpush.msra.mxu0 0.0
    %767 = vmatpush.msra.mxu0 0.0
    %768 = vmatpush.msra.mxu0 %v748
    %769 = vmatmul.f32.gmra.mxu0 %v751
    %v770 = vpop.f32.mrf.mxu0
    %v771 = vadd.f32 0.0, %v770
    %772 = vdwg.mxu0
    %773 = vrot.lane.b32.xlu0 %v90, 40
    %v774 = vpop.permute.xlu0 %773
    %v777 = vsel %vm102, %v746, 0
    %779 = vmatpush.msra.mxu0 0.0
    %780 = vmatpush.msra.mxu0 0.0
    %781 = vmatpush.msra.mxu0 0.0
    %782 = vmatpush.msra.mxu0 0.0
    %783 = vmatpush.msra.mxu0 0.0
    %784 = vmatpush.msra.mxu0 0.0
    %785 = vmatpush.msra.mxu0 0.0
    %786 = vmatpush.msra.mxu0 0.0
    %787 = vmatpush.msra.mxu0 0.0
    %788 = vmatpush.msra.mxu0 0.0
    %789 = vmatpush.msra.mxu0 0.0
    %790 = vmatpush.msra.mxu0 0.0
    %791 = vmatpush.msra.mxu0 0.0
    %792 = vmatpush.msra.mxu0 0.0
    %793 = vmatpush.msra.mxu0 0.0
    %794 = vmatpush.msra.mxu0 %v774
    %795 = vmatmul.f32.gmra.mxu0 %v777
    %v796 = vpop.f32.mrf.mxu0
    %v797 = vadd.f32 0.0, %v796
    %798 = vdwg.mxu0
    %v800 = vsel %vm102, %v771, 0
    %v803 = vsel %vm102, %v797, 0
    %805 = vmatpush.msra.mxu0 0.0
    %806 = vmatpush.msra.mxu0 0.0
    %807 = vmatpush.msra.mxu0 0.0
    %808 = vmatpush.msra.mxu0 0.0
    %809 = vmatpush.msra.mxu0 0.0
    %810 = vmatpush.msra.mxu0 0.0
    %811 = vmatpush.msra.mxu0 0.0
    %812 = vmatpush.msra.mxu0 0.0
    %813 = vmatpush.msra.mxu0 0.0
    %814 = vmatpush.msra.mxu0 0.0
    %815 = vmatpush.msra.mxu0 0.0
    %816 = vmatpush.msra.mxu0 0.0
    %817 = vmatpush.msra.mxu0 0.0
    %818 = vmatpush.msra.mxu0 0.0
    %819 = vmatpush.msra.mxu0 0.0
    %820 = vmatpush.msra.mxu0 %v95
    %821 = vmatmul.f32.gmra.mxu0 %v800
    %v822 = vpop.f32.mrf.mxu0
    %v823 = vadd.f32 0.0, %v822
    %824 = vmatmul.f32.gmra.mxu0 %v803
    %v825 = vpop.f32.mrf.mxu0
    %v826 = vadd.f32 0.0, %v825
    %827 = vdwg.mxu0
    %v828 = vadd.f32 %v645, %v823
    %v829 = vadd.f32 %v646, %v826
    %v830 = vsel %vm62, %v828, 0.0
    %831 = vadd.xlane.f32.xlu0 %v830
    %v832 = vpop.xlane.xlu0 %831
    %v833 = vsel %vm62, %v829, 0.0
    %834 = vadd.xlane.f32.xlu0 %v833
    %v835 = vpop.xlane.xlu0 %834
    %v836 = vrcp.pop 32.0
    %v837 = vmul.f32 32.0, %v836
    %v838 = vsub.f32 1.0, %v837
    %v839 = vmul.f32 %v836, %v838
    %v840 = vadd.f32 %v836, %v839
    %vm841 = vweird.f32 %v836
    %v842 = vsel %vm841, %v836, %v840
    %v843 = vmul.f32 %v832, %v842
    %v844 = vmul.f32 %v835, %v842
    %v845 = vsub.f32 %v828, %v843
    %v846 = vsub.f32 %v829, %v844
    %v847 = vmul.f32 %v845, %v845
    %v848 = vmul.f32 %v846, %v846
    %v849 = vsel %vm62, %v847, 0.0
    %850 = vadd.xlane.f32.xlu0 %v849
    %v851 = vpop.xlane.xlu0 %850
    %v852 = vsel %vm62, %v848, 0.0
    %853 = vadd.xlane.f32.xlu0 %v852
    %v854 = vpop.xlane.xlu0 %853
    %v855 = vmul.f32 %v851, %v842
    %v856 = vmul.f32 %v854, %v842
    %v857 = vadd.f32 %v855, 1e-05
    %v858 = vadd.f32 %v856, 1e-05
    %v859 = vrsqrt.pop %v857
    %v860 = vmul.f32 %v859, %v857
    %v861 = vmul.f32 %v860, %v859
    %v862 = vmul.f32 0.5, %v861
    %v863 = vsub.f32 1.5, %v862
    %v864 = vmul.f32 %v859, %v863
    %vm865 = vweird.f32 %v857
    %vm866 = vweird.f32 %v859
    %vm867 = vmor %vm865, %vm866
    %v868 = vsel %vm867, %v859, %v864
    %v869 = vrsqrt.pop %v858
    %v870 = vmul.f32 %v869, %v858
    %v871 = vmul.f32 %v870, %v869
    %v872 = vmul.f32 0.5, %v871
    %v873 = vsub.f32 1.5, %v872
    %v874 = vmul.f32 %v869, %v873
    %vm875 = vweird.f32 %v858
    %vm876 = vweird.f32 %v869
    %vm877 = vmor %vm875, %vm876
    %v878 = vsel %vm877, %v869, %v874
    %v879 = vmul.f32 %v845, %v868
    %v880 = vmul.f32 %v846, %v878
    %v881 = vperm.slane %v56, 4
    %v882 = vmul.f32 %v879, %v881
    %v883 = vmul.f32 %v880, %v881
    %v884 = vperm.slane %v56, 5
    %v885 = vadd.f32 %v882, %v884
    %v886 = vadd.f32 %v883, %v884
    %v887 = vld [vmem:[%s3] sm:$0xff]
    %v888 = vld [vmem:[%s3 + $0x8] sm:$0xff]
    %v889 = vld [vmem:[%s3 + $0x10] sm:$0xff]
    %v890 = vld [vmem:[%s3 + $0x18] sm:$0xff]
    %v891 = vperm.slane %v56, 2
    %v893 = vsel %vm62, %v885, 0
    %v896 = vsel %vm62, %v886, 0
    %898 = vmatpush.msra.mxu0 0.0
    %899 = vmatpush.msra.mxu0 0.0
    %900 = vmatpush.msra.mxu0 0.0
    %901 = vmatpush.msra.mxu0 0.0
    %902 = vmatpush.msra.mxu0 0.0
    %903 = vmatpush.msra.mxu0 0.0
    %904 = vmatpush.msra.mxu0 0.0
    %905 = vmatpush.msra.mxu0 0.0
    %906 = vmatpush.msra.mxu0 0.0
    %907 = vmatpush.msra.mxu0 0.0
    %908 = vmatpush.msra.mxu0 0.0
    %909 = vmatpush.msra.mxu0 0.0
    %910 = vmatpush.msra.mxu0 %v890
    %911 = vmatpush.msra.mxu0 %v889
    %912 = vmatpush.msra.mxu0 %v888
    %913 = vmatpush.msra.mxu0 %v887
    %914 = vmatmul.f32.gmra.mxu0 %v893
    %v915 = vpop.f32.mrf.mxu0
    %v916 = vadd.f32 %v891, %v915
    %917 = vmatmul.f32.gmra.mxu0 %v896
    %v918 = vpop.f32.mrf.mxu0
    %v919 = vadd.f32 %v891, %v918
    %920 = vdwg.mxu0
    %v921 = vmul.f32 %v916, 0.5
    %v922 = vmul.f32 %v919, 0.5
    %v923 = vmul.f32 %v916, 0.70710677
    %v924 = vmul.f32 %v919, 0.70710677
    %v925 = vmul.f32 %v923, %v923
    %v926 = vmin.f32 16.0, %v925
    %v927 = vmul.f32 %v926, 2.1237322e-06
    %v928 = vadd.f32 %v927, 0.00028619796
    %v929 = vmul.f32 %v926, %v928
    %v930 = vadd.f32 %v929, 0.0036580483
    %v931 = vmul.f32 %v926, %v930
    %v932 = vadd.f32 %v931, 0.05243302
    %v933 = vmul.f32 %v926, %v932
    %v934 = vadd.f32 %v933, 0.18741608
    %v935 = vmul.f32 %v926, %v934
    %v936 = vadd.f32 %v935, 1.1283791
    %v937 = vmul.f32 %v923, %v936
    %v938 = vmul.f32 %v926, 3.8918573e-05
    %v939 = vadd.f32 %v938, 0.001143296
    %v940 = vmul.f32 %v926, %v939
    %v941 = vadd.f32 %v940, 0.014752088
    %v942 = vmul.f32 %v926, %v941
    %v943 = vadd.f32 %v942, 0.112945676
    %v944 = vmul.f32 %v926, %v943
    %v945 = vadd.f32 %v944, 0.4994258
    %v946 = vmul.f32 %v926, %v945
    %v947 = vadd.f32 %v946, 1.0
    %v948 = vrcp.pop %v947
    %v949 = vmul.f32 %v947, %v948
    %v950 = vsub.f32 1.0, %v949
    %v951 = vmul.f32 %v948, %v950
    %v952 = vadd.f32 %v948, %v951
    %vm953 = vweird.f32 %v947
    %vm954 = vweird.f32 %v948
    %vm955 = vmor %vm953, %vm954
    %v956 = vsel %vm955, %v948, %v952
    %v957 = vand.u32 2147483647, %v947
    %vm958 = vcmp.eq.f32.partialorder %v957, 8.507059e+37
    %v959 = vand.u32 %v947, 2147483648
    %v960 = vor.u32 1.1754944e-38, %v959
    %v961 = vsel %vm958, %v960, %v956
    %v962 = vmul.f32 %v937, %v961
    %v963 = vmin.f32 %v962, 1.0
    %v964 = vmax.f32 %v963, -1.0
    %v965 = vmul.f32 %v924, %v924
    %v966 = vmin.f32 16.0, %v965
    %v967 = vmul.f32 %v966, 2.1237322e-06
    %v968 = vadd.f32 %v967, 0.00028619796
    %v969 = vmul.f32 %v966, %v968
    %v970 = vadd.f32 %v969, 0.0036580483
    %v971 = vmul.f32 %v966, %v970
    %v972 = vadd.f32 %v971, 0.05243302
    %v973 = vmul.f32 %v966, %v972
    %v974 = vadd.f32 %v973, 0.18741608
    %v975 = vmul.f32 %v966, %v974
    %v976 = vadd.f32 %v975, 1.1283791
    %v977 = vmul.f32 %v924, %v976
    %v978 = vmul.f32 %v966, 3.8918573e-05
    %v979 = vadd.f32 %v978, 0.001143296
    %v980 = vmul.f32 %v966, %v979
    %v981 = vadd.f32 %v980, 0.014752088
    %v982 = vmul.f32 %v966, %v981
    %v983 = vadd.f32 %v982, 0.112945676
    %v984 = vmul.f32 %v966, %v983
    %v985 = vadd.f32 %v984, 0.4994258
    %v986 = vmul.f32 %v966, %v985
    %v987 = vadd.f32 %v986, 1.0
    %v988 = vrcp.pop %v987
    %v989 = vmul.f32 %v987, %v988
    %v990 = vsub.f32 1.0, %v989
    %v991 = vmul.f32 %v988, %v990
    %v992 = vadd.f32 %v988, %v991
    %vm993 = vweird.f32 %v987
    %vm994 = vweird.f32 %v988
    %vm995 = vmor %vm993, %vm994
    %v996 = vsel %vm995, %v988, %v992
    %v997 = vand.u32 2147483647, %v987
    %vm998 = vcmp.eq.f32.partialorder %v997, 8.507059e+37
    %v999 = vand.u32 %v987, 2147483648
    %v1000 = vor.u32 1.1754944e-38, %v999
    %v1001 = vsel %vm998, %v1000, %v996
    %v1002 = vmul.f32 %v977, %v1001
    %v1003 = vmin.f32 %v1002, 1.0
    %v1004 = vmax.f32 %v1003, -1.0
    %v1005 = vadd.f32 %v964, 1.0
    %v1006 = vadd.f32 %v1004, 1.0
    %v1007 = vmul.f32 %v921, %v1005
    %v1008 = vmul.f32 %v922, %v1006
    %v1009 = vld [vmem:[%s4] sm:$0xff]
    %v1010 = vld [vmem:[%s4 + $0x8] sm:$0xff]
    %v1011 = vld [vmem:[%s4 + $0x10] sm:$0xff]
    %v1012 = vld [vmem:[%s4 + $0x18] sm:$0xff]
    %v1013 = vld [vmem:[%s4 + $0x20] sm:$0xff]
    %v1014 = vld [vmem:[%s4 + $0x28] sm:$0xff]
    %v1015 = vld [vmem:[%s4 + $0x30] sm:$0xff]
    %v1016 = vld [vmem:[%s4 + $0x38] sm:$0xff]
    %v1017 = vperm.slane %v56, 3
    %vm1018 = vcmask 523264
    %v1020 = vsel %vm1018, %v1007, 0
    %v1023 = vsel %vm1018, %v1008, 0
    %1025 = vmatpush.msra.mxu0 0.0
    %1026 = vmatpush.msra.mxu0 0.0
    %1027 = vmatpush.msra.mxu0 0.0
    %1028 = vmatpush.msra.mxu0 0.0
    %1029 = vmatpush.msra.mxu0 0.0
    %1030 = vmatpush.msra.mxu0 0.0
    %1031 = vmatpush.msra.mxu0 0.0
    %1032 = vmatpush.msra.mxu0 0.0
    %1033 = vmatpush.msra.mxu0 %v1016
    %1034 = vmatpush.msra.mxu0 %v1015
    %1035 = vmatpush.msra.mxu0 %v1014
    %1036 = vmatpush.msra.mxu0 %v1013
    %1037 = vmatpush.msra.mxu0 %v1012
    %1038 = vmatpush.msra.mxu0 %v1011
    %1039 = vmatpush.msra.mxu0 %v1010
    %1040 = vmatpush.msra.mxu0 %v1009
    %1041 = vmatmul.f32.gmra.mxu0 %v1020
    %v1042 = vpop.f32.mrf.mxu0
    %v1043 = vadd.f32 %v1017, %v1042
    %1044 = vmatmul.f32.gmra.mxu0 %v1023
    %v1045 = vpop.f32.mrf.mxu0
    %v1046 = vadd.f32 %v1017, %v1045
    %1047 = vdwg.mxu0
    %v1048 = vadd.f32 %v1043, %v885
    %v1049 = vadd.f32 %v1046, %v886
    %v1050 = vsel %vm62, %v1048, 0.0
    %1051 = vadd.xlane.f32.xlu0 %v1050
    %v1052 = vpop.xlane.xlu0 %1051
    %v1053 = vsel %vm62, %v1049, 0.0
    %1054 = vadd.xlane.f32.xlu0 %v1053
    %v1055 = vpop.xlane.xlu0 %1054
    %v1056 = vmul.f32 %v1052, %v842
    %v1057 = vmul.f32 %v1055, %v842
    %v1058 = vsub.f32 %v1048, %v1056
    %v1059 = vsub.f32 %v1049, %v1057
    %v1060 = vmul.f32 %v1058, %v1058
    %v1061 = vmul.f32 %v1059, %v1059
    %v1062 = vsel %vm62, %v1060, 0.0
    %1063 = vadd.xlane.f32.xlu0 %v1062
    %v1064 = vpop.xlane.xlu0 %1063
    %v1065 = vsel %vm62, %v1061, 0.0
    %1066 = vadd.xlane.f32.xlu0 %v1065
    %v1067 = vpop.xlane.xlu0 %1066
    %v1068 = vmul.f32 %v1064, %v842
    %v1069 = vmul.f32 %v1067, %v842
    %v1070 = vadd.f32 %v1068, 1e-05
    %v1071 = vadd.f32 %v1069, 1e-05
    %v1072 = vrsqrt.pop %v1070
    %v1073 = vmul.f32 %v1072, %v1070
    %v1074 = vmul.f32 %v1073, %v1072
    %v1075 = vmul.f32 0.5, %v1074
    %v1076 = vsub.f32 1.5, %v1075
    %v1077 = vmul.f32 %v1072, %v1076
    %vm1078 = vweird.f32 %v1070
    %vm1079 = vweird.f32 %v1072
    %vm1080 = vmor %vm1078, %vm1079
    %v1081 = vsel %vm1080, %v1072, %v1077
    %v1082 = vrsqrt.pop %v1071
    %v1083 = vmul.f32 %v1082, %v1071
    %v1084 = vmul.f32 %v1083, %v1082
    %v1085 = vmul.f32 0.5, %v1084
    %v1086 = vsub.f32 1.5, %v1085
    %v1087 = vmul.f32 %v1082, %v1086
    %vm1088 = vweird.f32 %v1071
    %vm1089 = vweird.f32 %v1082
    %vm1090 = vmor %vm1088, %vm1089
    %v1091 = vsel %vm1090, %v1082, %v1087
    %v1092 = vmul.f32 %v1058, %v1081
    %v1093 = vmul.f32 %v1059, %v1091
    %v1094 = vperm.slane %v56, 6
    %v1095 = vmul.f32 %v1092, %v1094
    %v1096 = vmul.f32 %v1093, %v1094
    %v1097 = vperm.slane %v56, 7
    %v1098 = vadd.f32 %v1095, %v1097
    %v1099 = vadd.f32 %v1096, %v1097
    %1100 = vst.msk [vmem:[#allocation7] sm:$0xff] %vm62, %v1098
    %1101 = vst.msk [vmem:[#allocation7 + $0x8] sm:$0xff] %vm62, %v1099
    // Predicated region
    $region34: #{tpu_custom_call.1} parent=1 // pred_check
      _
    $region35: #{tpu_custom_call.1} parent=1 // pred_check_branch
      %1103 = sbr.rel (0) target = $region37
    $region36: #{tpu_custom_call.1} parent=1 // pred_region
      %1105 = vsyncadd [#allocation4], 0
      %s1106 = sshll.u32 [#allocation7], 4
      %s1107 = int_to_ptr.vmem [resolvable:$true] %s1106
      %s1108 = sshll.u32 %s6, 4
      %s1109 = int_to_ptr.hbm [resolvable:$true] %s1108
      %1114 = dma.vmem_to_hbm [thread:$0]  %s1107, 256, %s1109, [#allocation4], 128, 128, 8
    $region37: #{tpu_custom_call.1} parent=1 // pred_fallthru
      _
    // Predicated region
    $region38: #{tpu_custom_call.1} parent=1 // pred_check
      _
    $region39: #{tpu_custom_call.1} parent=1 // pred_check_branch
      %1116 = sbr.rel (0) target = $region41
    $region40: #{tpu_custom_call.1} parent=1 // pred_region
      %1118 = dma.done [#allocation4], 256
    $region41: #{tpu_custom_call.1} parent=1 // pred_fallthru
      _
    %1119 = vsyncpa [#allocation3], 1
    %1120 = vsyncpa [#allocation6], 1
    %1121 = vsyncpa [#allocation4], 1

</llo_original>
